<compile_context>
chip_gen: v7x
topology: tpu7x:2x2x1
jax: 0.10.0
libtpu: 0.0.40
codegen_flags: <defaults>
</compile_context>

<pallas_src>
import functools
import math

import jax
import jax.numpy as jnp
from jax.experimental import pallas as pl
from jax.experimental.pallas import tpu as pltpu

_LANE = 128


def _self_attention_kernel(x_ref, wqkv_ref, bqkv_ref, wo_ref, bo_ref, o_ref, *,
                           batch, seq_len, num_heads, head_dim, embed_dim):
    # Single grid step: the whole [B*N, E] activation slab is resident in VMEM.
    x = x_ref[...]                                              # [B*N, E] f32

    # Fused Q/K/V projection (1/sqrt(head_dim) already folded into Wq / bq).
    qkv = jnp.dot(x, wqkv_ref[...],
                  preferred_element_type=jnp.float32)           # [B*N, 3E] f32
    qkv = qkv + bqkv_ref[...]                                   # [1, 3E] broadcasts

    # Per-(batch, head) attention from static row/lane slices of qkv — no
    # head-major reshape/transpose relayouts.  B*H is tiny; fully unrolled.
    # TODO(synk): for production N (>= ~512) replace the full [N, N] scores
    # with a KV-tiled online-softmax grid (KV axis last, "arbitrary"), with
    # the tile budget derived from v7x's 64 MiB VMEM and an explicit
    # vmem_limit_bytes.
    ctx_rows = []
    for b in range(batch):
        r0 = b * seq_len
        head_ctx = []
        for h in range(num_heads):
            c0 = h * head_dim
            q = qkv[r0:r0 + seq_len, c0:c0 + head_dim]                       # [N, Dh]
            k = qkv[r0:r0 + seq_len,
                    embed_dim + c0:embed_dim + c0 + head_dim]                # [N, Dh]
            v = qkv[r0:r0 + seq_len,
                    2 * embed_dim + c0:2 * embed_dim + c0 + head_dim]        # [N, Dh]

            s = jnp.einsum('nd,md->nm', q, k,
                           preferred_element_type=jnp.float32)               # [N, N]
            # Numerically-stable softmax in f32; reciprocal goes to the EUP slot.
            s = s - jnp.max(s, axis=-1, keepdims=True)
            e = jnp.exp(s)
            p = e * pl.reciprocal(jnp.sum(e, axis=-1, keepdims=True),
                                  approx=True)
            head_ctx.append(jnp.dot(p, v,
                                    preferred_element_type=jnp.float32))     # [N, Dh]
        ctx_rows.append(jnp.concatenate(head_ctx, axis=1))                   # [N, E]
    ctx = jnp.concatenate(ctx_rows, axis=0)                                  # [B*N, E]

    # attn_dropout is identity in eval mode.  Wo's output columns are padded
    # to a 128-lane multiple at prep time, so this store is unmasked/lane-dense.
    out = jnp.dot(ctx, wo_ref[...],
                  preferred_element_type=jnp.float32) + bo_ref[...]
    o_ref[...] = out.astype(o_ref.dtype)


def prepare_params(params, *, num_heads):
    """One-time parameter prep (call once at init, NOT per forward).

    - Fuses Wq/Wk/Wv into one [E, 3E] matrix and the biases into [1, 3E].
    - Folds the 1/sqrt(head_dim) attention scale into Wq and bq.
    - Zero-pads Wo / bo output columns to a multiple of 128 lanes so the
      kernel's final store is lane-dense (padding sliced off in the wrapper).
    At production E, additionally pre-cast wqkv / wo to bf16 here.
    """
    E = params["wq"].shape[0]
    head_dim = E // num_heads
    scale = 1.0 / math.sqrt(head_dim)
    e_pad = max(_LANE, ((E + _LANE - 1) // _LANE) * _LANE)

    wqkv = jnp.concatenate(
        [params["wq"] * scale, params["wk"], params["wv"]], axis=1)       # [E, 3E]
    bqkv = jnp.concatenate(
        [params["bq"] * scale, params["bk"], params["bv"]],
        axis=0).reshape(1, 3 * E)                                         # [1, 3E]
    wo = jnp.pad(params["wo"], ((0, 0), (0, e_pad - E)))                  # [E, e_pad]
    bo = jnp.pad(params["bo"], (0, e_pad - E)).reshape(1, e_pad)          # [1, e_pad]
    return {"wqkv": wqkv, "bqkv": bqkv, "wo": wo, "bo": bo}


@functools.partial(jax.jit, static_argnames=("num_heads",))
def self_attention(x, fused, *, num_heads):
    """x: [B, N, E] float32. fused: output of prepare_params()."""
    B, N, E = x.shape
    assert E % num_heads == 0
    head_dim = E // num_heads
    BN = B * N
    e_pad = fused["wo"].shape[1]

    kernel = functools.partial(_self_attention_kernel, batch=B, seq_len=N,
                               num_heads=num_heads, head_dim=head_dim,
                               embed_dim=E)

    out = pl.pallas_call(
        kernel,
        out_shape=jax.ShapeDtypeStruct((BN, e_pad), x.dtype),
        grid_spec=pltpu.PrefetchScalarGridSpec(
            num_scalar_prefetch=0,
            grid=(1,),                                   # single step: whole problem
            in_specs=[
                pl.BlockSpec((BN, E), lambda i: (0, 0)),        # x (flattened)
                pl.BlockSpec((E, 3 * E), lambda i: (0, 0)),     # fused Wqkv
                pl.BlockSpec((1, 3 * E), lambda i: (0, 0)),     # fused bias
                pl.BlockSpec((E, e_pad), lambda i: (0, 0)),     # Wo (lane-padded)
                pl.BlockSpec((1, e_pad), lambda i: (0, 0)),     # bo (lane-padded)
            ],
            out_specs=pl.BlockSpec((BN, e_pad), lambda i: (0, 0)),
        ),
        compiler_params=pltpu.CompilerParams(
            dimension_semantics=("arbitrary",)),
    )(x.reshape(BN, E), fused["wqkv"], fused["bqkv"], fused["wo"], fused["bo"])

    # Drop the lane padding and restore [B, N, E] outside the kernel.
    return out[:, :E].reshape(B, N, E)


def init_params(key, embed_dim):
    """Deterministic synthetic parameters.

    PyTorch nn.Linear weight shape is [out, in]; we store the transpose
    [in, out] so the kernel does x @ W + b.
    """
    keys = jax.random.split(key, 8)
    bound = 1.0 / math.sqrt(embed_dim)

    def w(k):
        return jax.random.uniform(k, (embed_dim, embed_dim), jnp.float32,
                                  -bound, bound)

    def b(k):
        return jax.random.uniform(k, (embed_dim,), jnp.float32, -bound, bound)

    return {
        "wq": w(keys[0]), "bq": b(keys[1]),
        "wk": w(keys[2]), "bk": b(keys[3]),
        "wv": w(keys[4]), "bv": b(keys[5]),
        "wo": w(keys[6]), "bo": b(keys[7]),
    }


def _reference(x, params, num_heads):
    """Pure-JAX f32 reference mirroring the PyTorch forward (eval mode)."""
    B, N, E = x.shape
    Dh = E // num_heads
    q = (x @ params["wq"] + params["bq"]).reshape(B, N, num_heads, Dh).transpose(0, 2, 1, 3)
    k = (x @ params["wk"] + params["bk"]).reshape(B, N, num_heads, Dh).transpose(0, 2, 1, 3)
    v = (x @ params["wv"] + params["bv"]).reshape(B, N, num_heads, Dh).transpose(0, 2, 1, 3)
    attn = jnp.einsum('bhnd,bhmd->bhnm', q, k) / math.sqrt(Dh)
    attn = jax.nn.softmax(attn, axis=-1)
    out = jnp.einsum('bhnm,bhmd->bhnd', attn, v).transpose(0, 2, 1, 3).reshape(B, N, E)
    return out @ params["wo"] + params["bo"]


if __name__ == "__main__":
    # Config: n_embd=32, num_heads=4, dropout=0.0 (eval -> identity), bias=True
    B, N, E, H = 2, 8, 32, 4

    key = jax.random.PRNGKey(0)
    kx, kp = jax.random.split(key)
    x = jax.random.normal(kx, (B, N, E), jnp.float32)
    params = init_params(kp, E)
    fused = prepare_params(params, num_heads=H)   # one-time weight prep, hoisted

    out = jax.block_until_ready(self_attention(x, fused, num_heads=H))
    ref = _reference(x, params, H)

    assert out.shape == (B, N, E)
    # Kernel math is all f32; the only deliberate deviation is the approx EUP
    # reciprocal in the softmax denominator (~2^-12 relative), so a 5e-3
    # tolerance leaves generous headroom.
    assert jnp.allclose(out, ref, atol=5e-3, rtol=5e-3), "mismatch vs reference"

    print("KERNEL_OK")
</pallas_src>

<mosaic_0001>
module attributes {stable_mosaic.version = 11 : i64} {
  func.func @_self_attention_kernel(%arg0: i32, %arg1: memref<16x32xf32, #tpu.memory_space<vmem>>, %arg2: memref<32x96xf32, #tpu.memory_space<vmem>>, %arg3: memref<1x96xf32, #tpu.memory_space<vmem>>, %arg4: memref<32x128xf32, #tpu.memory_space<vmem>>, %arg5: memref<1x128xf32, #tpu.memory_space<vmem>>, %arg6: memref<16x128xf32, #tpu.memory_space<vmem>>) attributes {dimension_semantics = [#tpu.dimension_semantics<arbitrary>], iteration_bounds = array<i64: 1>, scalar_prefetch = 0 : i64, scratch_operands = 0 : i64, tpu.core_type = #tpu.core_type<tc>, window_params = [{pipeline_mode = #tpu.pipeline_mode<synchronous>, transform_indices = @transform_0, window_bounds = array<i64: 16, 32>}, {pipeline_mode = #tpu.pipeline_mode<synchronous>, transform_indices = @transform_1, window_bounds = array<i64: 32, 96>}, {pipeline_mode = #tpu.pipeline_mode<synchronous>, transform_indices = @transform_2, window_bounds = array<i64: 1, 96>}, {pipeline_mode = #tpu.pipeline_mode<synchronous>, transform_indices = @transform_3, window_bounds = array<i64: 32, 128>}, {pipeline_mode = #tpu.pipeline_mode<synchronous>, transform_indices = @transform_4, window_bounds = array<i64: 1, 128>}, {pipeline_mode = #tpu.pipeline_mode<synchronous>, transform_indices = @transform_5, window_bounds = array<i64: 16, 128>}]} {
    %c0 = arith.constant 0 : index
    %c0_0 = arith.constant 0 : index
    %0 = vector.load %arg1[%c0, %c0_0] : memref<16x32xf32, #tpu.memory_space<vmem>>, vector<16x32xf32>
    %c0_1 = arith.constant 0 : index
    %c0_2 = arith.constant 0 : index
    %1 = vector.load %arg2[%c0_1, %c0_2] : memref<32x96xf32, #tpu.memory_space<vmem>>, vector<32x96xf32>
    %cst = arith.constant dense<0.000000e+00> : vector<16x96xf32>
    %2 = tpu.matmul %0, %1, %cst {dimension_numbers = #tpu.dot_dimension_numbers<[1], [0], [0], [1], [0, 0, 1, 1], [], []>} : vector<16x32xf32>, vector<32x96xf32>, vector<16x96xf32> -> vector<16x96xf32>
    %c0_3 = arith.constant 0 : index
    %c0_4 = arith.constant 0 : index
    %3 = vector.load %arg3[%c0_3, %c0_4] : memref<1x96xf32, #tpu.memory_space<vmem>>, vector<1x96xf32>
    %4 = vector.broadcast %3 : vector<1x96xf32> to vector<16x96xf32>
    %5 = arith.addf %2, %4 : vector<16x96xf32>
    %6 = vector.extract_strided_slice %5 {offsets = [0, 0], sizes = [8, 8], strides = [1, 1]} : vector<16x96xf32> to vector<8x8xf32>
    %7 = vector.extract_strided_slice %5 {offsets = [0, 32], sizes = [8, 8], strides = [1, 1]} : vector<16x96xf32> to vector<8x8xf32>
    %8 = vector.extract_strided_slice %5 {offsets = [0, 64], sizes = [8, 8], strides = [1, 1]} : vector<16x96xf32> to vector<8x8xf32>
    "tpu.trace_start"() <{level = 10 : i32, message = "nd,md->nm"}> : () -> ()
    %cst_5 = arith.constant dense<0.000000e+00> : vector<8x8xf32>
    %9 = tpu.matmul %6, %7, %cst_5 {dimension_numbers = #tpu.dot_dimension_numbers<[1], [1], [0], [0], [0, 0, 1, 0], [], []>} : vector<8x8xf32>, vector<8x8xf32>, vector<8x8xf32> -> vector<8x8xf32>
    "tpu.trace_stop"() : () -> ()
    %cst_6 = arith.constant dense<0xFF800000> : vector<8xf32>
    %10 = vector.multi_reduction <maximumf>, %9, %cst_6 [1] : vector<8x8xf32> to vector<8xf32>
    %11 = vector.shape_cast %10 : vector<8xf32> to vector<8x1xf32>
    %12 = vector.broadcast %11 : vector<8x1xf32> to vector<8x8xf32>
    %13 = arith.subf %9, %12 : vector<8x8xf32>
    %14 = math.exp %13 : vector<8x8xf32>
    %cst_7 = arith.constant dense<0.000000e+00> : vector<8xf32>
    %15 = vector.multi_reduction <add>, %14, %cst_7 [1] : vector<8x8xf32> to vector<8xf32>
    %16 = vector.shape_cast %15 : vector<8xf32> to vector<8x1xf32>
    %17 = tpu.reciprocal %16 {approx = true} : vector<8x1xf32> -> vector<8x1xf32>
    %18 = vector.broadcast %17 : vector<8x1xf32> to vector<8x8xf32>
    %19 = arith.mulf %14, %18 : vector<8x8xf32>
    %cst_8 = arith.constant dense<0.000000e+00> : vector<8x8xf32>
    %20 = tpu.matmul %19, %8, %cst_8 {dimension_numbers = #tpu.dot_dimension_numbers<[1], [0], [0], [1], [0, 0, 1, 1], [], []>} : vector<8x8xf32>, vector<8x8xf32>, vector<8x8xf32> -> vector<8x8xf32>
    %21 = vector.extract_strided_slice %5 {offsets = [0, 8], sizes = [8, 8], strides = [1, 1]} : vector<16x96xf32> to vector<8x8xf32>
    %22 = vector.extract_strided_slice %5 {offsets = [0, 40], sizes = [8, 8], strides = [1, 1]} : vector<16x96xf32> to vector<8x8xf32>
    %23 = vector.extract_strided_slice %5 {offsets = [0, 72], sizes = [8, 8], strides = [1, 1]} : vector<16x96xf32> to vector<8x8xf32>
    "tpu.trace_start"() <{level = 10 : i32, message = "nd,md->nm"}> : () -> ()
    %cst_9 = arith.constant dense<0.000000e+00> : vector<8x8xf32>
    %24 = tpu.matmul %21, %22, %cst_9 {dimension_numbers = #tpu.dot_dimension_numbers<[1], [1], [0], [0], [0, 0, 1, 0], [], []>} : vector<8x8xf32>, vector<8x8xf32>, vector<8x8xf32> -> vector<8x8xf32>
    "tpu.trace_stop"() : () -> ()
    %cst_10 = arith.constant dense<0xFF800000> : vector<8xf32>
    %25 = vector.multi_reduction <maximumf>, %24, %cst_10 [1] : vector<8x8xf32> to vector<8xf32>
    %26 = vector.shape_cast %25 : vector<8xf32> to vector<8x1xf32>
    %27 = vector.broadcast %26 : vector<8x1xf32> to vector<8x8xf32>
    %28 = arith.subf %24, %27 : vector<8x8xf32>
    %29 = math.exp %28 : vector<8x8xf32>
    %cst_11 = arith.constant dense<0.000000e+00> : vector<8xf32>
    %30 = vector.multi_reduction <add>, %29, %cst_11 [1] : vector<8x8xf32> to vector<8xf32>
    %31 = vector.shape_cast %30 : vector<8xf32> to vector<8x1xf32>
    %32 = tpu.reciprocal %31 {approx = true} : vector<8x1xf32> -> vector<8x1xf32>
    %33 = vector.broadcast %32 : vector<8x1xf32> to vector<8x8xf32>
    %34 = arith.mulf %29, %33 : vector<8x8xf32>
    %cst_12 = arith.constant dense<0.000000e+00> : vector<8x8xf32>
    %35 = tpu.matmul %34, %23, %cst_12 {dimension_numbers = #tpu.dot_dimension_numbers<[1], [0], [0], [1], [0, 0, 1, 1], [], []>} : vector<8x8xf32>, vector<8x8xf32>, vector<8x8xf32> -> vector<8x8xf32>
    %36 = vector.extract_strided_slice %5 {offsets = [0, 16], sizes = [8, 8], strides = [1, 1]} : vector<16x96xf32> to vector<8x8xf32>
    %37 = vector.extract_strided_slice %5 {offsets = [0, 48], sizes = [8, 8], strides = [1, 1]} : vector<16x96xf32> to vector<8x8xf32>
    %38 = vector.extract_strided_slice %5 {offsets = [0, 80], sizes = [8, 8], strides = [1, 1]} : vector<16x96xf32> to vector<8x8xf32>
    "tpu.trace_start"() <{level = 10 : i32, message = "nd,md->nm"}> : () -> ()
    %cst_13 = arith.constant dense<0.000000e+00> : vector<8x8xf32>
    %39 = tpu.matmul %36, %37, %cst_13 {dimension_numbers = #tpu.dot_dimension_numbers<[1], [1], [0], [0], [0, 0, 1, 0], [], []>} : vector<8x8xf32>, vector<8x8xf32>, vector<8x8xf32> -> vector<8x8xf32>
    "tpu.trace_stop"() : () -> ()
    %cst_14 = arith.constant dense<0xFF800000> : vector<8xf32>
    %40 = vector.multi_reduction <maximumf>, %39, %cst_14 [1] : vector<8x8xf32> to vector<8xf32>
    %41 = vector.shape_cast %40 : vector<8xf32> to vector<8x1xf32>
    %42 = vector.broadcast %41 : vector<8x1xf32> to vector<8x8xf32>
    %43 = arith.subf %39, %42 : vector<8x8xf32>
    %44 = math.exp %43 : vector<8x8xf32>
    %cst_15 = arith.constant dense<0.000000e+00> : vector<8xf32>
    %45 = vector.multi_reduction <add>, %44, %cst_15 [1] : vector<8x8xf32> to vector<8xf32>
    %46 = vector.shape_cast %45 : vector<8xf32> to vector<8x1xf32>
    %47 = tpu.reciprocal %46 {approx = true} : vector<8x1xf32> -> vector<8x1xf32>
    %48 = vector.broadcast %47 : vector<8x1xf32> to vector<8x8xf32>
    %49 = arith.mulf %44, %48 : vector<8x8xf32>
    %cst_16 = arith.constant dense<0.000000e+00> : vector<8x8xf32>
    %50 = tpu.matmul %49, %38, %cst_16 {dimension_numbers = #tpu.dot_dimension_numbers<[1], [0], [0], [1], [0, 0, 1, 1], [], []>} : vector<8x8xf32>, vector<8x8xf32>, vector<8x8xf32> -> vector<8x8xf32>
    %51 = vector.extract_strided_slice %5 {offsets = [0, 24], sizes = [8, 8], strides = [1, 1]} : vector<16x96xf32> to vector<8x8xf32>
    %52 = vector.extract_strided_slice %5 {offsets = [0, 56], sizes = [8, 8], strides = [1, 1]} : vector<16x96xf32> to vector<8x8xf32>
    %53 = vector.extract_strided_slice %5 {offsets = [0, 88], sizes = [8, 8], strides = [1, 1]} : vector<16x96xf32> to vector<8x8xf32>
    "tpu.trace_start"() <{level = 10 : i32, message = "nd,md->nm"}> : () -> ()
    %cst_17 = arith.constant dense<0.000000e+00> : vector<8x8xf32>
    %54 = tpu.matmul %51, %52, %cst_17 {dimension_numbers = #tpu.dot_dimension_numbers<[1], [1], [0], [0], [0, 0, 1, 0], [], []>} : vector<8x8xf32>, vector<8x8xf32>, vector<8x8xf32> -> vector<8x8xf32>
    "tpu.trace_stop"() : () -> ()
    %cst_18 = arith.constant dense<0xFF800000> : vector<8xf32>
    %55 = vector.multi_reduction <maximumf>, %54, %cst_18 [1] : vector<8x8xf32> to vector<8xf32>
    %56 = vector.shape_cast %55 : vector<8xf32> to vector<8x1xf32>
    %57 = vector.broadcast %56 : vector<8x1xf32> to vector<8x8xf32>
    %58 = arith.subf %54, %57 : vector<8x8xf32>
    %59 = math.exp %58 : vector<8x8xf32>
    %cst_19 = arith.constant dense<0.000000e+00> : vector<8xf32>
    %60 = vector.multi_reduction <add>, %59, %cst_19 [1] : vector<8x8xf32> to vector<8xf32>
    %61 = vector.shape_cast %60 : vector<8xf32> to vector<8x1xf32>
    %62 = tpu.reciprocal %61 {approx = true} : vector<8x1xf32> -> vector<8x1xf32>
    %63 = vector.broadcast %62 : vector<8x1xf32> to vector<8x8xf32>
    %64 = arith.mulf %59, %63 : vector<8x8xf32>
    %cst_20 = arith.constant dense<0.000000e+00> : vector<8x8xf32>
    %65 = tpu.matmul %64, %53, %cst_20 {dimension_numbers = #tpu.dot_dimension_numbers<[1], [0], [0], [1], [0, 0, 1, 1], [], []>} : vector<8x8xf32>, vector<8x8xf32>, vector<8x8xf32> -> vector<8x8xf32>
    %66 = tpu.concatenate %20, %35, %50, %65 in 1 : vector<8x8xf32>, vector<8x8xf32>, vector<8x8xf32>, vector<8x8xf32> -> vector<8x32xf32>
    %67 = vector.extract_strided_slice %5 {offsets = [8, 0], sizes = [8, 8], strides = [1, 1]} : vector<16x96xf32> to vector<8x8xf32>
    %68 = vector.extract_strided_slice %5 {offsets = [8, 32], sizes = [8, 8], strides = [1, 1]} : vector<16x96xf32> to vector<8x8xf32>
    %69 = vector.extract_strided_slice %5 {offsets = [8, 64], sizes = [8, 8], strides = [1, 1]} : vector<16x96xf32> to vector<8x8xf32>
    "tpu.trace_start"() <{level = 10 : i32, message = "nd,md->nm"}> : () -> ()
    %cst_21 = arith.constant dense<0.000000e+00> : vector<8x8xf32>
    %70 = tpu.matmul %67, %68, %cst_21 {dimension_numbers = #tpu.dot_dimension_numbers<[1], [1], [0], [0], [0, 0, 1, 0], [], []>} : vector<8x8xf32>, vector<8x8xf32>, vector<8x8xf32> -> vector<8x8xf32>
    "tpu.trace_stop"() : () -> ()
    %cst_22 = arith.constant dense<0xFF800000> : vector<8xf32>
    %71 = vector.multi_reduction <maximumf>, %70, %cst_22 [1] : vector<8x8xf32> to vector<8xf32>
    %72 = vector.shape_cast %71 : vector<8xf32> to vector<8x1xf32>
    %73 = vector.broadcast %72 : vector<8x1xf32> to vector<8x8xf32>
    %74 = arith.subf %70, %73 : vector<8x8xf32>
    %75 = math.exp %74 : vector<8x8xf32>
    %cst_23 = arith.constant dense<0.000000e+00> : vector<8xf32>
    %76 = vector.multi_reduction <add>, %75, %cst_23 [1] : vector<8x8xf32> to vector<8xf32>
    %77 = vector.shape_cast %76 : vector<8xf32> to vector<8x1xf32>
    %78 = tpu.reciprocal %77 {approx = true} : vector<8x1xf32> -> vector<8x1xf32>
    %79 = vector.broadcast %78 : vector<8x1xf32> to vector<8x8xf32>
    %80 = arith.mulf %75, %79 : vector<8x8xf32>
    %cst_24 = arith.constant dense<0.000000e+00> : vector<8x8xf32>
    %81 = tpu.matmul %80, %69, %cst_24 {dimension_numbers = #tpu.dot_dimension_numbers<[1], [0], [0], [1], [0, 0, 1, 1], [], []>} : vector<8x8xf32>, vector<8x8xf32>, vector<8x8xf32> -> vector<8x8xf32>
    %82 = vector.extract_strided_slice %5 {offsets = [8, 8], sizes = [8, 8], strides = [1, 1]} : vector<16x96xf32> to vector<8x8xf32>
    %83 = vector.extract_strided_slice %5 {offsets = [8, 40], sizes = [8, 8], strides = [1, 1]} : vector<16x96xf32> to vector<8x8xf32>
    %84 = vector.extract_strided_slice %5 {offsets = [8, 72], sizes = [8, 8], strides = [1, 1]} : vector<16x96xf32> to vector<8x8xf32>
    "tpu.trace_start"() <{level = 10 : i32, message = "nd,md->nm"}> : () -> ()
    %cst_25 = arith.constant dense<0.000000e+00> : vector<8x8xf32>
    %85 = tpu.matmul %82, %83, %cst_25 {dimension_numbers = #tpu.dot_dimension_numbers<[1], [1], [0], [0], [0, 0, 1, 0], [], []>} : vector<8x8xf32>, vector<8x8xf32>, vector<8x8xf32> -> vector<8x8xf32>
    "tpu.trace_stop"() : () -> ()
    %cst_26 = arith.constant dense<0xFF800000> : vector<8xf32>
    %86 = vector.multi_reduction <maximumf>, %85, %cst_26 [1] : vector<8x8xf32> to vector<8xf32>
    %87 = vector.shape_cast %86 : vector<8xf32> to vector<8x1xf32>
    %88 = vector.broadcast %87 : vector<8x1xf32> to vector<8x8xf32>
    %89 = arith.subf %85, %88 : vector<8x8xf32>
    %90 = math.exp %89 : vector<8x8xf32>
    %cst_27 = arith.constant dense<0.000000e+00> : vector<8xf32>
    %91 = vector.multi_reduction <add>, %90, %cst_27 [1] : vector<8x8xf32> to vector<8xf32>
    %92 = vector.shape_cast %91 : vector<8xf32> to vector<8x1xf32>
    %93 = tpu.reciprocal %92 {approx = true} : vector<8x1xf32> -> vector<8x1xf32>
    %94 = vector.broadcast %93 : vector<8x1xf32> to vector<8x8xf32>
    %95 = arith.mulf %90, %94 : vector<8x8xf32>
    %cst_28 = arith.constant dense<0.000000e+00> : vector<8x8xf32>
    %96 = tpu.matmul %95, %84, %cst_28 {dimension_numbers = #tpu.dot_dimension_numbers<[1], [0], [0], [1], [0, 0, 1, 1], [], []>} : vector<8x8xf32>, vector<8x8xf32>, vector<8x8xf32> -> vector<8x8xf32>
    %97 = vector.extract_strided_slice %5 {offsets = [8, 16], sizes = [8, 8], strides = [1, 1]} : vector<16x96xf32> to vector<8x8xf32>
    %98 = vector.extract_strided_slice %5 {offsets = [8, 48], sizes = [8, 8], strides = [1, 1]} : vector<16x96xf32> to vector<8x8xf32>
    %99 = vector.extract_strided_slice %5 {offsets = [8, 80], sizes = [8, 8], strides = [1, 1]} : vector<16x96xf32> to vector<8x8xf32>
    "tpu.trace_start"() <{level = 10 : i32, message = "nd,md->nm"}> : () -> ()
    %cst_29 = arith.constant dense<0.000000e+00> : vector<8x8xf32>
    %100 = tpu.matmul %97, %98, %cst_29 {dimension_numbers = #tpu.dot_dimension_numbers<[1], [1], [0], [0], [0, 0, 1, 0], [], []>} : vector<8x8xf32>, vector<8x8xf32>, vector<8x8xf32> -> vector<8x8xf32>
    "tpu.trace_stop"() : () -> ()
    %cst_30 = arith.constant dense<0xFF800000> : vector<8xf32>
    %101 = vector.multi_reduction <maximumf>, %100, %cst_30 [1] : vector<8x8xf32> to vector<8xf32>
    %102 = vector.shape_cast %101 : vector<8xf32> to vector<8x1xf32>
    %103 = vector.broadcast %102 : vector<8x1xf32> to vector<8x8xf32>
    %104 = arith.subf %100, %103 : vector<8x8xf32>
    %105 = math.exp %104 : vector<8x8xf32>
    %cst_31 = arith.constant dense<0.000000e+00> : vector<8xf32>
    %106 = vector.multi_reduction <add>, %105, %cst_31 [1] : vector<8x8xf32> to vector<8xf32>
    %107 = vector.shape_cast %106 : vector<8xf32> to vector<8x1xf32>
    %108 = tpu.reciprocal %107 {approx = true} : vector<8x1xf32> -> vector<8x1xf32>
    %109 = vector.broadcast %108 : vector<8x1xf32> to vector<8x8xf32>
    %110 = arith.mulf %105, %109 : vector<8x8xf32>
    %cst_32 = arith.constant dense<0.000000e+00> : vector<8x8xf32>
    %111 = tpu.matmul %110, %99, %cst_32 {dimension_numbers = #tpu.dot_dimension_numbers<[1], [0], [0], [1], [0, 0, 1, 1], [], []>} : vector<8x8xf32>, vector<8x8xf32>, vector<8x8xf32> -> vector<8x8xf32>
    %112 = vector.extract_strided_slice %5 {offsets = [8, 24], sizes = [8, 8], strides = [1, 1]} : vector<16x96xf32> to vector<8x8xf32>
    %113 = vector.extract_strided_slice %5 {offsets = [8, 56], sizes = [8, 8], strides = [1, 1]} : vector<16x96xf32> to vector<8x8xf32>
    %114 = vector.extract_strided_slice %5 {offsets = [8, 88], sizes = [8, 8], strides = [1, 1]} : vector<16x96xf32> to vector<8x8xf32>
    "tpu.trace_start"() <{level = 10 : i32, message = "nd,md->nm"}> : () -> ()
    %cst_33 = arith.constant dense<0.000000e+00> : vector<8x8xf32>
    %115 = tpu.matmul %112, %113, %cst_33 {dimension_numbers = #tpu.dot_dimension_numbers<[1], [1], [0], [0], [0, 0, 1, 0], [], []>} : vector<8x8xf32>, vector<8x8xf32>, vector<8x8xf32> -> vector<8x8xf32>
    "tpu.trace_stop"() : () -> ()
    %cst_34 = arith.constant dense<0xFF800000> : vector<8xf32>
    %116 = vector.multi_reduction <maximumf>, %115, %cst_34 [1] : vector<8x8xf32> to vector<8xf32>
    %117 = vector.shape_cast %116 : vector<8xf32> to vector<8x1xf32>
    %118 = vector.broadcast %117 : vector<8x1xf32> to vector<8x8xf32>
    %119 = arith.subf %115, %118 : vector<8x8xf32>
    %120 = math.exp %119 : vector<8x8xf32>
    %cst_35 = arith.constant dense<0.000000e+00> : vector<8xf32>
    %121 = vector.multi_reduction <add>, %120, %cst_35 [1] : vector<8x8xf32> to vector<8xf32>
    %122 = vector.shape_cast %121 : vector<8xf32> to vector<8x1xf32>
    %123 = tpu.reciprocal %122 {approx = true} : vector<8x1xf32> -> vector<8x1xf32>
    %124 = vector.broadcast %123 : vector<8x1xf32> to vector<8x8xf32>
    %125 = arith.mulf %120, %124 : vector<8x8xf32>
    %cst_36 = arith.constant dense<0.000000e+00> : vector<8x8xf32>
    %126 = tpu.matmul %125, %114, %cst_36 {dimension_numbers = #tpu.dot_dimension_numbers<[1], [0], [0], [1], [0, 0, 1, 1], [], []>} : vector<8x8xf32>, vector<8x8xf32>, vector<8x8xf32> -> vector<8x8xf32>
    %127 = tpu.concatenate %81, %96, %111, %126 in 1 : vector<8x8xf32>, vector<8x8xf32>, vector<8x8xf32>, vector<8x8xf32> -> vector<8x32xf32>
    %128 = tpu.concatenate %66, %127 in 0 : vector<8x32xf32>, vector<8x32xf32> -> vector<16x32xf32>
    %c0_37 = arith.constant 0 : index
    %c0_38 = arith.constant 0 : index
    %129 = vector.load %arg4[%c0_37, %c0_38] : memref<32x128xf32, #tpu.memory_space<vmem>>, vector<32x128xf32>
    %cst_39 = arith.constant dense<0.000000e+00> : vector<16x128xf32>
    %130 = tpu.matmul %128, %129, %cst_39 {dimension_numbers = #tpu.dot_dimension_numbers<[1], [0], [0], [1], [0, 0, 1, 1], [], []>} : vector<16x32xf32>, vector<32x128xf32>, vector<16x128xf32> -> vector<16x128xf32>
    %c0_40 = arith.constant 0 : index
    %c0_41 = arith.constant 0 : index
    %131 = vector.load %arg5[%c0_40, %c0_41] : memref<1x128xf32, #tpu.memory_space<vmem>>, vector<1x128xf32>
    %132 = vector.broadcast %131 : vector<1x128xf32> to vector<16x128xf32>
    %133 = arith.addf %130, %132 : vector<16x128xf32>
    %c0_42 = arith.constant 0 : index
    %c0_43 = arith.constant 0 : index
    %134 = vector.load %arg6[%c0_42, %c0_43] : memref<16x128xf32, #tpu.memory_space<vmem>>, vector<16x128xf32>
    tpu.vector_store %arg6[%c0_42, %c0_43], %133 {strides = array<i32>} : memref<16x128xf32, #tpu.memory_space<vmem>>, vector<16x128xf32>,
    return
  }
  func.func @transform_0(%arg0: i32) -> (i32, i32) {
    %c0_i32 = arith.constant 0 : i32
    %c0_i32_0 = arith.constant 0 : i32
    %c0_i32_1 = arith.constant 0 : i32
    return %c0_i32, %c0_i32_0 : i32, i32
  }
  func.func @transform_1(%arg0: i32) -> (i32, i32) {
    %c0_i32 = arith.constant 0 : i32
    %c0_i32_0 = arith.constant 0 : i32
    %c0_i32_1 = arith.constant 0 : i32
    return %c0_i32, %c0_i32_0 : i32, i32
  }
  func.func @transform_2(%arg0: i32) -> (i32, i32) {
    %c0_i32 = arith.constant 0 : i32
    %c0_i32_0 = arith.constant 0 : i32
    %c0_i32_1 = arith.constant 0 : i32
    return %c0_i32, %c0_i32_0 : i32, i32
  }
  func.func @transform_3(%arg0: i32) -> (i32, i32) {
    %c0_i32 = arith.constant 0 : i32
    %c0_i32_0 = arith.constant 0 : i32
    %c0_i32_1 = arith.constant 0 : i32
    return %c0_i32, %c0_i32_0 : i32, i32
  }
  func.func @transform_4(%arg0: i32) -> (i32, i32) {
    %c0_i32 = arith.constant 0 : i32
    %c0_i32_0 = arith.constant 0 : i32
    %c0_i32_1 = arith.constant 0 : i32
    return %c0_i32, %c0_i32_0 : i32, i32
  }
  func.func @transform_5(%arg0: i32) -> (i32, i32) {
    %c0_i32 = arith.constant 0 : i32
    %c0_i32_0 = arith.constant 0 : i32
    %c0_i32_1 = arith.constant 0 : i32
    return %c0_i32, %c0_i32_0 : i32, i32
  }
}

</mosaic_0001>

<llo_original>
// kernel: self_attention.1
$region0: #{self_attention.1}
  #allocation0 [shape = 'u32[]', space=smem, size = 0x4, offset = 0x4, fixed_abs, tag = 'smem constant byte address 0x4 - core index']
  #allocation1 [shape = 'u32[144,128]{1,0:T(1,128)}', space=vmem, size = 0x12000, scoped, tag = 'internal scratch']
  %s0 = inlined_call_operand.hbm [shape: f32[16,32], index: 0, kind: input, shape index: {}]
  %s1 = inlined_call_operand.hbm [shape: f32[32,96], index: 1, kind: input, shape index: {}]
  %s2 = inlined_call_operand.vmem [shape: f32[1,96], index: 2, kind: input, shape index: {}]
  %s3 = inlined_call_operand.hbm [shape: f32[32,128], index: 3, kind: input, shape index: {}]
  %s4 = inlined_call_operand.vmem [shape: f32[1,128], index: 4, kind: input, shape index: {}]
  %s5 = inlined_call_operand.vmem [shape: f32[16,128], index: 5, kind: output, shape index: {}]
  %s6 = sld [smem:[#allocation0]]
  $region42: #{self_attention.1} parent=0
    _
  %s8 = ssub.s32 1, %s6
  %s9 = scalar_select 0, %s8, %s6
  $region1: #{self_attention.1} parent=0
    #allocation2 [shape = 'u8[8192]{0}', space=vmem, size = 0x2000, scoped, tag = 'input window, operand 0, single buffered']
    #allocation3 [shape = 's32[1]{0}', space=sflag, size = 0x4, scoped, tag = 'scoped memory for self_attention.1']
    #allocation4 [shape = 'u8[16384]{0}', space=vmem, size = 0x4000, scoped, tag = 'input window, operand 1, single buffered']
    #allocation5 [shape = 's32[1]{0}', space=sflag, size = 0x4, scoped, tag = 'scoped memory for self_attention.1']
    #allocation6 [shape = 'u8[16384]{0}', space=vmem, size = 0x4000, scoped, tag = 'input window, operand 3, single buffered']
    %10 = vsyncpa [#allocation3], 0
    %11 = vsyncpa [#allocation5], 0
    // Predicated region
    $region2: #{self_attention.1} parent=1 // pred_check
      _
    $region3: #{self_attention.1} parent=1 // pred_check_branch
      %13 = sbr.rel (0) target = $region5
    $region4: #{self_attention.1} parent=1 // pred_region
      %s15 = ssub.s32 256, 256
      %16 = vsyncadd [#allocation3], %s15
      %s17 = sshll.u32 [#allocation2], 4
      %s18 = int_to_ptr.vmem [resolvable:$true] %s17
      %23 = dma.hbm_to_vmem [thread:$0]  %s0, 256, %s18, [#allocation3], 128, 128, 8
    $region5: #{self_attention.1} parent=1 // pred_fallthru
      _
    // Predicated region
    $region6: #{self_attention.1} parent=1 // pred_check
      _
    $region7: #{self_attention.1} parent=1 // pred_check_branch
      %25 = sbr.rel (0) target = $region9
    $region8: #{self_attention.1} parent=1 // pred_region
      %s27 = ssub.s32 512, 512
      %28 = vsyncadd [#allocation5], %s27
      %s29 = sshll.u32 [#allocation4], 4
      %s30 = int_to_ptr.vmem [resolvable:$true] %s29
      %35 = dma.hbm_to_vmem [thread:$0]  %s1, 512, %s30, [#allocation5], 128, 128, 8
    $region9: #{self_attention.1} parent=1 // pred_fallthru
      _
    // Predicated region
    $region10: #{self_attention.1} parent=1 // pred_check
      _
    $region11: #{self_attention.1} parent=1 // pred_check_branch
      %37 = sbr.rel (0) target = $region13
    $region12: #{self_attention.1} parent=1 // pred_region
      _
    $region13: #{self_attention.1} parent=1 // pred_fallthru
      _
    // Predicated region
    $region14: #{self_attention.1} parent=1 // pred_check
      _
    $region15: #{self_attention.1} parent=1 // pred_check_branch
      %39 = sbr.rel (0) target = $region17
    $region16: #{self_attention.1} parent=1 // pred_region
      %s41 = ssub.s32 512, 512
      %42 = vsyncadd [#allocation5], %s41
      %s43 = sshll.u32 [#allocation6], 4
      %s44 = int_to_ptr.vmem [resolvable:$true] %s43
      %49 = dma.hbm_to_vmem [thread:$0]  %s3, 512, %s44, [#allocation5], 128, 128, 8
    $region17: #{self_attention.1} parent=1 // pred_fallthru
      _
    // Predicated region
    $region18: #{self_attention.1} parent=1 // pred_check
      _
    $region19: #{self_attention.1} parent=1 // pred_check_branch
      %51 = sbr.rel (0) target = $region21
    $region20: #{self_attention.1} parent=1 // pred_region
      _
    $region21: #{self_attention.1} parent=1 // pred_fallthru
      _
    // Predicated region
    $region22: #{self_attention.1} parent=1 // pred_check
      _
    $region23: #{self_attention.1} parent=1 // pred_check_branch
      %53 = sbr.rel (0) target = $region25
    $region24: #{self_attention.1} parent=1 // pred_region
      %54 = dma.done [#allocation3], 256
    $region25: #{self_attention.1} parent=1 // pred_fallthru
      _
    // Predicated region
    $region26: #{self_attention.1} parent=1 // pred_check
      _
    $region27: #{self_attention.1} parent=1 // pred_check_branch
      %56 = sbr.rel (0) target = $region29
    $region28: #{self_attention.1} parent=1 // pred_region
      %57 = dma.done [#allocation5], 512
    $region29: #{self_attention.1} parent=1 // pred_fallthru
      _
    // Predicated region
    $region30: #{self_attention.1} parent=1 // pred_check
      _
    $region31: #{self_attention.1} parent=1 // pred_check_branch
      %59 = sbr.rel (0) target = $region33
    $region32: #{self_attention.1} parent=1 // pred_region
      %60 = dma.done [#allocation5], 512
    $region33: #{self_attention.1} parent=1 // pred_fallthru
      _
    %v61 = vld [vmem:[#allocation2] sm:$0xff]
    %v62 = vld [vmem:[#allocation2 + $0x8] sm:$0xff]
    %v63 = vld [vmem:[#allocation4] sm:$0xff]
    %v64 = vld [vmem:[#allocation4 + $0x8] sm:$0xff]
    %v65 = vld [vmem:[#allocation4 + $0x10] sm:$0xff]
    %v66 = vld [vmem:[#allocation4 + $0x18] sm:$0xff]
    %v67 = vld [vmem:[%s2] sm:$0x1]
    %v69 = vlaneseq
    %v70 = vshrl.u32 %v69, 7
    %v71 = vsub.s32 0, %v70
    %v72 = vrot.slane %v67, %v71
    %vm74 = vcmask 261120
    %v76 = vsel %vm74, %v61, 0
    %v79 = vsel %vm74, %v62, 0
    %81 = vmatprep.subr.mxu0 0.0
    %82 = vmatpush1.msra.mxu0 %v63
    %83 = vmatprep.subr.mxu0 0.0
    %84 = vmatpush1.msra.mxu0 %v64
    %85 = vmatprep.subr.mxu0 0.0
    %86 = vmatpush1.msra.mxu0 %v65
    %87 = vmatprep.subr.mxu0 0.0
    %88 = vmatpush1.msra.mxu0 %v66
    %89 = vmatprep.subr.mxu0 0.0
    %90 = vmatpush1.msra.mxu0 0.0
    %91 = vmatprep.subr.mxu0 0.0
    %92 = vmatpush1.msra.mxu0 0.0
    %93 = vmatprep.subr.mxu0 0.0
    %94 = vmatpush1.msra.mxu0 0.0
    %95 = vmatprep.subr.mxu0 0.0
    %96 = vmatpush1.msra.mxu0 0.0
    %97 = vmatprep.subr.mxu0 0.0
    %98 = vmatpush1.msra.mxu0 0.0
    %99 = vmatprep.subr.mxu0 0.0
    %100 = vmatpush1.msra.mxu0 0.0
    %101 = vmatprep.subr.mxu0 0.0
    %102 = vmatpush1.msra.mxu0 0.0
    %103 = vmatprep.subr.mxu0 0.0
    %104 = vmatpush1.msra.mxu0 0.0
    %105 = vmatprep.subr.mxu0 0.0
    %106 = vmatpush1.msra.mxu0 0.0
    %107 = vmatprep.subr.mxu0 0.0
    %108 = vmatpush1.msra.mxu0 0.0
    %109 = vmatprep.subr.mxu0 0.0
    %110 = vmatpush1.msra.mxu0 0.0
    %111 = vmatprep.subr.mxu0 0.0
    %112 = vmatpush1.msra.mxu0 0.0
    %113 = vmatprep.subr.mxu0 0.0
    %114 = vmatpush1.msra.mxu0 0.0
    %115 = vmatprep.subr.mxu0 0.0
    %116 = vmatpush1.msra.mxu0 0.0
    %117 = vmatprep.subr.mxu0 0.0
    %118 = vmatpush1.msra.mxu0 0.0
    %119 = vmatprep.subr.mxu0 0.0
    %120 = vmatpush1.msra.mxu0 0.0
    %121 = vmatprep.subr.mxu0 0.0
    %122 = vmatpush1.msra.mxu0 0.0
    %123 = vmatprep.subr.mxu0 0.0
    %124 = vmatpush1.msra.mxu0 0.0
    %125 = vmatprep.subr.mxu0 0.0
    %126 = vmatpush1.msra.mxu0 0.0
    %127 = vmatprep.subr.mxu0 0.0
    %128 = vmatpush1.msra.mxu0 0.0
    %129 = vmatprep.subr.mxu0 0.0
    %130 = vmatpush1.msra.mxu0 0.0
    %131 = vmatprep.subr.mxu0 0.0
    %132 = vmatpush1.msra.mxu0 0.0
    %133 = vmatprep.subr.mxu0 0.0
    %134 = vmatpush1.msra.mxu0 0.0
    %135 = vmatprep.subr.mxu0 0.0
    %136 = vmatpush1.msra.mxu0 0.0
    %137 = vmatprep.subr.mxu0 0.0
    %138 = vmatpush1.msra.mxu0 0.0
    %139 = vmatprep.subr.mxu0 0.0
    %140 = vmatpush1.msra.mxu0 0.0
    %141 = vmatprep.subr.mxu0 0.0
    %142 = vmatpush1.msra.mxu0 0.0
    %143 = vmatprep.subr.mxu0 0.0
    %144 = vmatpush1.msra.mxu0 0.0
    %145 = vmatprep.mubr.f32.mxu0 0.0
    %146 = vmatmul.mubr.f32.gmra.mrb[0].mxu0 %v76
    %v147 = vpop.f32.mrb[0].mxu0
    %v148 = vadd.f32 %v72, %v147
    %v149 = vpop.f32.mrb[0].mxu0
    %150 = vmatprep.mubr.f32.mxu0 0.0
    %151 = vmatmul.mubr.f32.gmra.mrb[0].mxu0 %v79
    %v152 = vpop.f32.mrb[0].mxu0
    %v153 = vadd.f32 %v72, %v152
    %v154 = vpop.f32.mrb[0].mxu0
    %155 = vdwg.mxu0
    %157 = vrot.lane.b32.xlu0 %v148, 96
    %v158 = vpop.permute.xlu0 %157
    %vm159 = vcmask 64512
    %v160 = vsel %vm159, %v148, 0
    %v162 = vsel %vm159, %v158, 0
    %164 = vmatprep.subr.mxu0 0.0
    %165 = vmatpush1.xpose.msra.mxu0 %v162
    %166 = vmatprep.subr.mxu0 0.0
    %167 = vmatpush1.xpose.msra.mxu0 0.0
    %168 = vmatprep.subr.mxu0 0.0
    %169 = vmatpush1.xpose.msra.mxu0 0.0
    %170 = vmatprep.subr.mxu0 0.0
    %171 = vmatpush1.xpose.msra.mxu0 0.0
    %172 = vmatprep.subr.mxu0 0.0
    %173 = vmatpush1.xpose.msra.mxu0 0.0
    %174 = vmatprep.subr.mxu0 0.0
    %175 = vmatpush1.xpose.msra.mxu0 0.0
    %176 = vmatprep.subr.mxu0 0.0
    %177 = vmatpush1.xpose.msra.mxu0 0.0
    %178 = vmatprep.subr.mxu0 0.0
    %179 = vmatpush1.xpose.msra.mxu0 0.0
    %180 = vmatprep.subr.mxu0 0.0
    %181 = vmatpush1.xpose.msra.mxu0 0.0
    %182 = vmatprep.subr.mxu0 0.0
    %183 = vmatpush1.xpose.msra.mxu0 0.0
    %184 = vmatprep.subr.mxu0 0.0
    %185 = vmatpush1.xpose.msra.mxu0 0.0
    %186 = vmatprep.subr.mxu0 0.0
    %187 = vmatpush1.xpose.msra.mxu0 0.0
    %188 = vmatprep.subr.mxu0 0.0
    %189 = vmatpush1.xpose.msra.mxu0 0.0
    %190 = vmatprep.subr.mxu0 0.0
    %191 = vmatpush1.xpose.msra.mxu0 0.0
    %192 = vmatprep.subr.mxu0 0.0
    %193 = vmatpush1.xpose.msra.mxu0 0.0
    %194 = vmatprep.subr.mxu0 0.0
    %195 = vmatpush1.xpose.msra.mxu0 0.0
    %196 = vmatprep.subr.mxu0 0.0
    %197 = vmatpush1.xpose.msra.mxu0 0.0
    %198 = vmatprep.subr.mxu0 0.0
    %199 = vmatpush1.xpose.msra.mxu0 0.0
    %200 = vmatprep.subr.mxu0 0.0
    %201 = vmatpush1.xpose.msra.mxu0 0.0
    %202 = vmatprep.subr.mxu0 0.0
    %203 = vmatpush1.xpose.msra.mxu0 0.0
    %204 = vmatprep.subr.mxu0 0.0
    %205 = vmatpush1.xpose.msra.mxu0 0.0
    %206 = vmatprep.subr.mxu0 0.0
    %207 = vmatpush1.xpose.msra.mxu0 0.0
    %208 = vmatprep.subr.mxu0 0.0
    %209 = vmatpush1.xpose.msra.mxu0 0.0
    %210 = vmatprep.subr.mxu0 0.0
    %211 = vmatpush1.xpose.msra.mxu0 0.0
    %212 = vmatprep.subr.mxu0 0.0
    %213 = vmatpush1.xpose.msra.mxu0 0.0
    %214 = vmatprep.subr.mxu0 0.0
    %215 = vmatpush1.xpose.msra.mxu0 0.0
    %216 = vmatprep.subr.mxu0 0.0
    %217 = vmatpush1.xpose.msra.mxu0 0.0
    %218 = vmatprep.subr.mxu0 0.0
    %219 = vmatpush1.xpose.msra.mxu0 0.0
    %220 = vmatprep.subr.mxu0 0.0
    %221 = vmatpush1.xpose.msra.mxu0 0.0
    %222 = vmatprep.subr.mxu0 0.0
    %223 = vmatpush1.xpose.msra.mxu0 0.0
    %224 = vmatprep.subr.mxu0 0.0
    %225 = vmatpush1.xpose.msra.mxu0 0.0
    %226 = vmatprep.subr.mxu0 0.0
    %227 = vmatpush1.xpose.msra.mxu0 0.0
    %228 = vmatprep.mubr.f32.mxu0 0.0
    %229 = vmatmul.mubr.f32.gmra.mrb[0].mxu0 %v160
    %v230 = vpop.f32.mrb[0].mxu0
    %v231 = vadd.f32 0.0, %v230
    %v232 = vpop.f32.mrb[0].mxu0
    %233 = vdwg.mxu0
    %v234 = vsel %vm159, %v231, -inf
    %235 = vmax.xlane.f32.xlu0 %v234
    %v236 = vpop.xlane.xlu0 %235
    %v237 = vsub.f32 %v231, %v236
    %v238 = vmul.f32 %v237, 1.442695
    %v239 = vpow.pop %v238
    %v240 = vsel %vm159, %v239, 0.0
    %241 = vadd.xlane.f32.xlu0 %v240
    %v242 = vpop.xlane.xlu0 %241
    %v243 = vrcp.pop %v242
    %v244 = vmul.f32 %v239, %v243
    %245 = vrot.lane.b32.xlu0 %v148, 64
    %v246 = vpop.permute.xlu0 %245
    %v249 = vsel %vm159, %v244, 0
    %251 = vmatprep.subr.mxu0 0.0
    %252 = vmatpush1.msra.mxu0 %v246
    %253 = vmatprep.subr.mxu0 0.0
    %254 = vmatpush1.msra.mxu0 0.0
    %255 = vmatprep.subr.mxu0 0.0
    %256 = vmatpush1.msra.mxu0 0.0
    %257 = vmatprep.subr.mxu0 0.0
    %258 = vmatpush1.msra.mxu0 0.0
    %259 = vmatprep.subr.mxu0 0.0
    %260 = vmatpush1.msra.mxu0 0.0
    %261 = vmatprep.subr.mxu0 0.0
    %262 = vmatpush1.msra.mxu0 0.0
    %263 = vmatprep.subr.mxu0 0.0
    %264 = vmatpush1.msra.mxu0 0.0
    %265 = vmatprep.subr.mxu0 0.0
    %266 = vmatpush1.msra.mxu0 0.0
    %267 = vmatprep.subr.mxu0 0.0
    %268 = vmatpush1.msra.mxu0 0.0
    %269 = vmatprep.subr.mxu0 0.0
    %270 = vmatpush1.msra.mxu0 0.0
    %271 = vmatprep.subr.mxu0 0.0
    %272 = vmatpush1.msra.mxu0 0.0
    %273 = vmatprep.subr.mxu0 0.0
    %274 = vmatpush1.msra.mxu0 0.0
    %275 = vmatprep.subr.mxu0 0.0
    %276 = vmatpush1.msra.mxu0 0.0
    %277 = vmatprep.subr.mxu0 0.0
    %278 = vmatpush1.msra.mxu0 0.0
    %279 = vmatprep.subr.mxu0 0.0
    %280 = vmatpush1.msra.mxu0 0.0
    %281 = vmatprep.subr.mxu0 0.0
    %282 = vmatpush1.msra.mxu0 0.0
    %283 = vmatprep.subr.mxu0 0.0
    %284 = vmatpush1.msra.mxu0 0.0
    %285 = vmatprep.subr.mxu0 0.0
    %286 = vmatpush1.msra.mxu0 0.0
    %287 = vmatprep.subr.mxu0 0.0
    %288 = vmatpush1.msra.mxu0 0.0
    %289 = vmatprep.subr.mxu0 0.0
    %290 = vmatpush1.msra.mxu0 0.0
    %291 = vmatprep.subr.mxu0 0.0
    %292 = vmatpush1.msra.mxu0 0.0
    %293 = vmatprep.subr.mxu0 0.0
    %294 = vmatpush1.msra.mxu0 0.0
    %295 = vmatprep.subr.mxu0 0.0
    %296 = vmatpush1.msra.mxu0 0.0
    %297 = vmatprep.subr.mxu0 0.0
    %298 = vmatpush1.msra.mxu0 0.0
    %299 = vmatprep.subr.mxu0 0.0
    %300 = vmatpush1.msra.mxu0 0.0
    %301 = vmatprep.subr.mxu0 0.0
    %302 = vmatpush1.msra.mxu0 0.0
    %303 = vmatprep.subr.mxu0 0.0
    %304 = vmatpush1.msra.mxu0 0.0
    %305 = vmatprep.subr.mxu0 0.0
    %306 = vmatpush1.msra.mxu0 0.0
    %307 = vmatprep.subr.mxu0 0.0
    %308 = vmatpush1.msra.mxu0 0.0
    %309 = vmatprep.subr.mxu0 0.0
    %310 = vmatpush1.msra.mxu0 0.0
    %311 = vmatprep.subr.mxu0 0.0
    %312 = vmatpush1.msra.mxu0 0.0
    %313 = vmatprep.subr.mxu0 0.0
    %314 = vmatpush1.msra.mxu0 0.0
    %315 = vmatprep.mubr.f32.mxu0 0.0
    %316 = vmatmul.mubr.f32.gmra.mrb[0].mxu0 %v249
    %v317 = vpop.f32.mrb[0].mxu0
    %v318 = vadd.f32 0.0, %v317
    %v319 = vpop.f32.mrb[0].mxu0
    %320 = vdwg.mxu0
    %321 = vrot.lane.b32.xlu0 %v148, 120
    %v322 = vpop.permute.xlu0 %321
    %323 = vrot.lane.b32.xlu0 %v148, 88
    %v324 = vpop.permute.xlu0 %323
    %v325 = vsel %vm159, %v322, 0
    %v327 = vsel %vm159, %v324, 0
    %329 = vmatprep.subr.mxu0 0.0
    %330 = vmatpush1.xpose.msra.mxu0 %v327
    %331 = vmatprep.subr.mxu0 0.0
    %332 = vmatpush1.xpose.msra.mxu0 0.0
    %333 = vmatprep.subr.mxu0 0.0
    %334 = vmatpush1.xpose.msra.mxu0 0.0
    %335 = vmatprep.subr.mxu0 0.0
    %336 = vmatpush1.xpose.msra.mxu0 0.0
    %337 = vmatprep.subr.mxu0 0.0
    %338 = vmatpush1.xpose.msra.mxu0 0.0
    %339 = vmatprep.subr.mxu0 0.0
    %340 = vmatpush1.xpose.msra.mxu0 0.0
    %341 = vmatprep.subr.mxu0 0.0
    %342 = vmatpush1.xpose.msra.mxu0 0.0
    %343 = vmatprep.subr.mxu0 0.0
    %344 = vmatpush1.xpose.msra.mxu0 0.0
    %345 = vmatprep.subr.mxu0 0.0
    %346 = vmatpush1.xpose.msra.mxu0 0.0
    %347 = vmatprep.subr.mxu0 0.0
    %348 = vmatpush1.xpose.msra.mxu0 0.0
    %349 = vmatprep.subr.mxu0 0.0
    %350 = vmatpush1.xpose.msra.mxu0 0.0
    %351 = vmatprep.subr.mxu0 0.0
    %352 = vmatpush1.xpose.msra.mxu0 0.0
    %353 = vmatprep.subr.mxu0 0.0
    %354 = vmatpush1.xpose.msra.mxu0 0.0
    %355 = vmatprep.subr.mxu0 0.0
    %356 = vmatpush1.xpose.msra.mxu0 0.0
    %357 = vmatprep.subr.mxu0 0.0
    %358 = vmatpush1.xpose.msra.mxu0 0.0
    %359 = vmatprep.subr.mxu0 0.0
    %360 = vmatpush1.xpose.msra.mxu0 0.0
    %361 = vmatprep.subr.mxu0 0.0
    %362 = vmatpush1.xpose.msra.mxu0 0.0
    %363 = vmatprep.subr.mxu0 0.0
    %364 = vmatpush1.xpose.msra.mxu0 0.0
    %365 = vmatprep.subr.mxu0 0.0
    %366 = vmatpush1.xpose.msra.mxu0 0.0
    %367 = vmatprep.subr.mxu0 0.0
    %368 = vmatpush1.xpose.msra.mxu0 0.0
    %369 = vmatprep.subr.mxu0 0.0
    %370 = vmatpush1.xpose.msra.mxu0 0.0
    %371 = vmatprep.subr.mxu0 0.0
    %372 = vmatpush1.xpose.msra.mxu0 0.0
    %373 = vmatprep.subr.mxu0 0.0
    %374 = vmatpush1.xpose.msra.mxu0 0.0
    %375 = vmatprep.subr.mxu0 0.0
    %376 = vmatpush1.xpose.msra.mxu0 0.0
    %377 = vmatprep.subr.mxu0 0.0
    %378 = vmatpush1.xpose.msra.mxu0 0.0
    %379 = vmatprep.subr.mxu0 0.0
    %380 = vmatpush1.xpose.msra.mxu0 0.0
    %381 = vmatprep.subr.mxu0 0.0
    %382 = vmatpush1.xpose.msra.mxu0 0.0
    %383 = vmatprep.subr.mxu0 0.0
    %384 = vmatpush1.xpose.msra.mxu0 0.0
    %385 = vmatprep.subr.mxu0 0.0
    %386 = vmatpush1.xpose.msra.mxu0 0.0
    %387 = vmatprep.subr.mxu0 0.0
    %388 = vmatpush1.xpose.msra.mxu0 0.0
    %389 = vmatprep.subr.mxu0 0.0
    %390 = vmatpush1.xpose.msra.mxu0 0.0
    %391 = vmatprep.subr.mxu0 0.0
    %392 = vmatpush1.xpose.msra.mxu0 0.0
    %393 = vmatprep.mubr.f32.mxu0 0.0
    %394 = vmatmul.mubr.f32.gmra.mrb[0].mxu0 %v325
    %v395 = vpop.f32.mrb[0].mxu0
    %v396 = vadd.f32 0.0, %v395
    %v397 = vpop.f32.mrb[0].mxu0
    %398 = vdwg.mxu0
    %v399 = vsel %vm159, %v396, -inf
    %400 = vmax.xlane.f32.xlu0 %v399
    %v401 = vpop.xlane.xlu0 %400
    %v402 = vsub.f32 %v396, %v401
    %v403 = vmul.f32 %v402, 1.442695
    %v404 = vpow.pop %v403
    %v405 = vsel %vm159, %v404, 0.0
    %406 = vadd.xlane.f32.xlu0 %v405
    %v407 = vpop.xlane.xlu0 %406
    %v408 = vrcp.pop %v407
    %v409 = vmul.f32 %v404, %v408
    %410 = vrot.lane.b32.xlu0 %v148, 56
    %v411 = vpop.permute.xlu0 %410
    %v414 = vsel %vm159, %v409, 0
    %416 = vmatprep.subr.mxu0 0.0
    %417 = vmatpush1.msra.mxu0 %v411
    %418 = vmatprep.subr.mxu0 0.0
    %419 = vmatpush1.msra.mxu0 0.0
    %420 = vmatprep.subr.mxu0 0.0
    %421 = vmatpush1.msra.mxu0 0.0
    %422 = vmatprep.subr.mxu0 0.0
    %423 = vmatpush1.msra.mxu0 0.0
    %424 = vmatprep.subr.mxu0 0.0
    %425 = vmatpush1.msra.mxu0 0.0
    %426 = vmatprep.subr.mxu0 0.0
    %427 = vmatpush1.msra.mxu0 0.0
    %428 = vmatprep.subr.mxu0 0.0
    %429 = vmatpush1.msra.mxu0 0.0
    %430 = vmatprep.subr.mxu0 0.0
    %431 = vmatpush1.msra.mxu0 0.0
    %432 = vmatprep.subr.mxu0 0.0
    %433 = vmatpush1.msra.mxu0 0.0
    %434 = vmatprep.subr.mxu0 0.0
    %435 = vmatpush1.msra.mxu0 0.0
    %436 = vmatprep.subr.mxu0 0.0
    %437 = vmatpush1.msra.mxu0 0.0
    %438 = vmatprep.subr.mxu0 0.0
    %439 = vmatpush1.msra.mxu0 0.0
    %440 = vmatprep.subr.mxu0 0.0
    %441 = vmatpush1.msra.mxu0 0.0
    %442 = vmatprep.subr.mxu0 0.0
    %443 = vmatpush1.msra.mxu0 0.0
    %444 = vmatprep.subr.mxu0 0.0
    %445 = vmatpush1.msra.mxu0 0.0
    %446 = vmatprep.subr.mxu0 0.0
    %447 = vmatpush1.msra.mxu0 0.0
    %448 = vmatprep.subr.mxu0 0.0
    %449 = vmatpush1.msra.mxu0 0.0
    %450 = vmatprep.subr.mxu0 0.0
    %451 = vmatpush1.msra.mxu0 0.0
    %452 = vmatprep.subr.mxu0 0.0
    %453 = vmatpush1.msra.mxu0 0.0
    %454 = vmatprep.subr.mxu0 0.0
    %455 = vmatpush1.msra.mxu0 0.0
    %456 = vmatprep.subr.mxu0 0.0
    %457 = vmatpush1.msra.mxu0 0.0
    %458 = vmatprep.subr.mxu0 0.0
    %459 = vmatpush1.msra.mxu0 0.0
    %460 = vmatprep.subr.mxu0 0.0
    %461 = vmatpush1.msra.mxu0 0.0
    %462 = vmatprep.subr.mxu0 0.0
    %463 = vmatpush1.msra.mxu0 0.0
    %464 = vmatprep.subr.mxu0 0.0
    %465 = vmatpush1.msra.mxu0 0.0
    %466 = vmatprep.subr.mxu0 0.0
    %467 = vmatpush1.msra.mxu0 0.0
    %468 = vmatprep.subr.mxu0 0.0
    %469 = vmatpush1.msra.mxu0 0.0
    %470 = vmatprep.subr.mxu0 0.0
    %471 = vmatpush1.msra.mxu0 0.0
    %472 = vmatprep.subr.mxu0 0.0
    %473 = vmatpush1.msra.mxu0 0.0
    %474 = vmatprep.subr.mxu0 0.0
    %475 = vmatpush1.msra.mxu0 0.0
    %476 = vmatprep.subr.mxu0 0.0
    %477 = vmatpush1.msra.mxu0 0.0
    %478 = vmatprep.subr.mxu0 0.0
    %479 = vmatpush1.msra.mxu0 0.0
    %480 = vmatprep.mubr.f32.mxu0 0.0
    %481 = vmatmul.mubr.f32.gmra.mrb[0].mxu0 %v414
    %v482 = vpop.f32.mrb[0].mxu0
    %v483 = vadd.f32 0.0, %v482
    %v484 = vpop.f32.mrb[0].mxu0
    %485 = vdwg.mxu0
    %486 = vrot.lane.b32.xlu0 %v148, 112
    %v487 = vpop.permute.xlu0 %486
    %488 = vrot.lane.b32.xlu0 %v148, 80
    %v489 = vpop.permute.xlu0 %488
    %v490 = vsel %vm159, %v487, 0
    %v492 = vsel %vm159, %v489, 0
    %494 = vmatprep.subr.mxu0 0.0
    %495 = vmatpush1.xpose.msra.mxu0 %v492
    %496 = vmatprep.subr.mxu0 0.0
    %497 = vmatpush1.xpose.msra.mxu0 0.0
    %498 = vmatprep.subr.mxu0 0.0
    %499 = vmatpush1.xpose.msra.mxu0 0.0
    %500 = vmatprep.subr.mxu0 0.0
    %501 = vmatpush1.xpose.msra.mxu0 0.0
    %502 = vmatprep.subr.mxu0 0.0
    %503 = vmatpush1.xpose.msra.mxu0 0.0
    %504 = vmatprep.subr.mxu0 0.0
    %505 = vmatpush1.xpose.msra.mxu0 0.0
    %506 = vmatprep.subr.mxu0 0.0
    %507 = vmatpush1.xpose.msra.mxu0 0.0
    %508 = vmatprep.subr.mxu0 0.0
    %509 = vmatpush1.xpose.msra.mxu0 0.0
    %510 = vmatprep.subr.mxu0 0.0
    %511 = vmatpush1.xpose.msra.mxu0 0.0
    %512 = vmatprep.subr.mxu0 0.0
    %513 = vmatpush1.xpose.msra.mxu0 0.0
    %514 = vmatprep.subr.mxu0 0.0
    %515 = vmatpush1.xpose.msra.mxu0 0.0
    %516 = vmatprep.subr.mxu0 0.0
    %517 = vmatpush1.xpose.msra.mxu0 0.0
    %518 = vmatprep.subr.mxu0 0.0
    %519 = vmatpush1.xpose.msra.mxu0 0.0
    %520 = vmatprep.subr.mxu0 0.0
    %521 = vmatpush1.xpose.msra.mxu0 0.0
    %522 = vmatprep.subr.mxu0 0.0
    %523 = vmatpush1.xpose.msra.mxu0 0.0
    %524 = vmatprep.subr.mxu0 0.0
    %525 = vmatpush1.xpose.msra.mxu0 0.0
    %526 = vmatprep.subr.mxu0 0.0
    %527 = vmatpush1.xpose.msra.mxu0 0.0
    %528 = vmatprep.subr.mxu0 0.0
    %529 = vmatpush1.xpose.msra.mxu0 0.0
    %530 = vmatprep.subr.mxu0 0.0
    %531 = vmatpush1.xpose.msra.mxu0 0.0
    %532 = vmatprep.subr.mxu0 0.0
    %533 = vmatpush1.xpose.msra.mxu0 0.0
    %534 = vmatprep.subr.mxu0 0.0
    %535 = vmatpush1.xpose.msra.mxu0 0.0
    %536 = vmatprep.subr.mxu0 0.0
    %537 = vmatpush1.xpose.msra.mxu0 0.0
    %538 = vmatprep.subr.mxu0 0.0
    %539 = vmatpush1.xpose.msra.mxu0 0.0
    %540 = vmatprep.subr.mxu0 0.0
    %541 = vmatpush1.xpose.msra.mxu0 0.0
    %542 = vmatprep.subr.mxu0 0.0
    %543 = vmatpush1.xpose.msra.mxu0 0.0
    %544 = vmatprep.subr.mxu0 0.0
    %545 = vmatpush1.xpose.msra.mxu0 0.0
    %546 = vmatprep.subr.mxu0 0.0
    %547 = vmatpush1.xpose.msra.mxu0 0.0
    %548 = vmatprep.subr.mxu0 0.0
    %549 = vmatpush1.xpose.msra.mxu0 0.0
    %550 = vmatprep.subr.mxu0 0.0
    %551 = vmatpush1.xpose.msra.mxu0 0.0
    %552 = vmatprep.subr.mxu0 0.0
    %553 = vmatpush1.xpose.msra.mxu0 0.0
    %554 = vmatprep.subr.mxu0 0.0
    %555 = vmatpush1.xpose.msra.mxu0 0.0
    %556 = vmatprep.subr.mxu0 0.0
    %557 = vmatpush1.xpose.msra.mxu0 0.0
    %558 = vmatprep.mubr.f32.mxu0 0.0
    %559 = vmatmul.mubr.f32.gmra.mrb[0].mxu0 %v490
    %v560 = vpop.f32.mrb[0].mxu0
    %v561 = vadd.f32 0.0, %v560
    %v562 = vpop.f32.mrb[0].mxu0
    %563 = vdwg.mxu0
    %v564 = vsel %vm159, %v561, -inf
    %565 = vmax.xlane.f32.xlu0 %v564
    %v566 = vpop.xlane.xlu0 %565
    %v567 = vsub.f32 %v561, %v566
    %v568 = vmul.f32 %v567, 1.442695
    %v569 = vpow.pop %v568
    %v570 = vsel %vm159, %v569, 0.0
    %571 = vadd.xlane.f32.xlu0 %v570
    %v572 = vpop.xlane.xlu0 %571
    %v573 = vrcp.pop %v572
    %v574 = vmul.f32 %v569, %v573
    %575 = vrot.lane.b32.xlu0 %v148, 48
    %v576 = vpop.permute.xlu0 %575
    %v579 = vsel %vm159, %v574, 0
    %581 = vmatprep.subr.mxu0 0.0
    %582 = vmatpush1.msra.mxu0 %v576
    %583 = vmatprep.subr.mxu0 0.0
    %584 = vmatpush1.msra.mxu0 0.0
    %585 = vmatprep.subr.mxu0 0.0
    %586 = vmatpush1.msra.mxu0 0.0
    %587 = vmatprep.subr.mxu0 0.0
    %588 = vmatpush1.msra.mxu0 0.0
    %589 = vmatprep.subr.mxu0 0.0
    %590 = vmatpush1.msra.mxu0 0.0
    %591 = vmatprep.subr.mxu0 0.0
    %592 = vmatpush1.msra.mxu0 0.0
    %593 = vmatprep.subr.mxu0 0.0
    %594 = vmatpush1.msra.mxu0 0.0
    %595 = vmatprep.subr.mxu0 0.0
    %596 = vmatpush1.msra.mxu0 0.0
    %597 = vmatprep.subr.mxu0 0.0
    %598 = vmatpush1.msra.mxu0 0.0
    %599 = vmatprep.subr.mxu0 0.0
    %600 = vmatpush1.msra.mxu0 0.0
    %601 = vmatprep.subr.mxu0 0.0
    %602 = vmatpush1.msra.mxu0 0.0
    %603 = vmatprep.subr.mxu0 0.0
    %604 = vmatpush1.msra.mxu0 0.0
    %605 = vmatprep.subr.mxu0 0.0
    %606 = vmatpush1.msra.mxu0 0.0
    %607 = vmatprep.subr.mxu0 0.0
    %608 = vmatpush1.msra.mxu0 0.0
    %609 = vmatprep.subr.mxu0 0.0
    %610 = vmatpush1.msra.mxu0 0.0
    %611 = vmatprep.subr.mxu0 0.0
    %612 = vmatpush1.msra.mxu0 0.0
    %613 = vmatprep.subr.mxu0 0.0
    %614 = vmatpush1.msra.mxu0 0.0
    %615 = vmatprep.subr.mxu0 0.0
    %616 = vmatpush1.msra.mxu0 0.0
    %617 = vmatprep.subr.mxu0 0.0
    %618 = vmatpush1.msra.mxu0 0.0
    %619 = vmatprep.subr.mxu0 0.0
    %620 = vmatpush1.msra.mxu0 0.0
    %621 = vmatprep.subr.mxu0 0.0
    %622 = vmatpush1.msra.mxu0 0.0
    %623 = vmatprep.subr.mxu0 0.0
    %624 = vmatpush1.msra.mxu0 0.0
    %625 = vmatprep.subr.mxu0 0.0
    %626 = vmatpush1.msra.mxu0 0.0
    %627 = vmatprep.subr.mxu0 0.0
    %628 = vmatpush1.msra.mxu0 0.0
    %629 = vmatprep.subr.mxu0 0.0
    %630 = vmatpush1.msra.mxu0 0.0
    %631 = vmatprep.subr.mxu0 0.0
    %632 = vmatpush1.msra.mxu0 0.0
    %633 = vmatprep.subr.mxu0 0.0
    %634 = vmatpush1.msra.mxu0 0.0
    %635 = vmatprep.subr.mxu0 0.0
    %636 = vmatpush1.msra.mxu0 0.0
    %637 = vmatprep.subr.mxu0 0.0
    %638 = vmatpush1.msra.mxu0 0.0
    %639 = vmatprep.subr.mxu0 0.0
    %640 = vmatpush1.msra.mxu0 0.0
    %641 = vmatprep.subr.mxu0 0.0
    %642 = vmatpush1.msra.mxu0 0.0
    %643 = vmatprep.subr.mxu0 0.0
    %644 = vmatpush1.msra.mxu0 0.0
    %645 = vmatprep.mubr.f32.mxu0 0.0
    %646 = vmatmul.mubr.f32.gmra.mrb[0].mxu0 %v579
    %v647 = vpop.f32.mrb[0].mxu0
    %v648 = vadd.f32 0.0, %v647
    %v649 = vpop.f32.mrb[0].mxu0
    %650 = vdwg.mxu0
    %651 = vrot.lane.b32.xlu0 %v148, 104
    %v652 = vpop.permute.xlu0 %651
    %653 = vrot.lane.b32.xlu0 %v148, 72
    %v654 = vpop.permute.xlu0 %653
    %v655 = vsel %vm159, %v652, 0
    %v657 = vsel %vm159, %v654, 0
    %659 = vmatprep.subr.mxu0 0.0
    %660 = vmatpush1.xpose.msra.mxu0 %v657
    %661 = vmatprep.subr.mxu0 0.0
    %662 = vmatpush1.xpose.msra.mxu0 0.0
    %663 = vmatprep.subr.mxu0 0.0
    %664 = vmatpush1.xpose.msra.mxu0 0.0
    %665 = vmatprep.subr.mxu0 0.0
    %666 = vmatpush1.xpose.msra.mxu0 0.0
    %667 = vmatprep.subr.mxu0 0.0
    %668 = vmatpush1.xpose.msra.mxu0 0.0
    %669 = vmatprep.subr.mxu0 0.0
    %670 = vmatpush1.xpose.msra.mxu0 0.0
    %671 = vmatprep.subr.mxu0 0.0
    %672 = vmatpush1.xpose.msra.mxu0 0.0
    %673 = vmatprep.subr.mxu0 0.0
    %674 = vmatpush1.xpose.msra.mxu0 0.0
    %675 = vmatprep.subr.mxu0 0.0
    %676 = vmatpush1.xpose.msra.mxu0 0.0
    %677 = vmatprep.subr.mxu0 0.0
    %678 = vmatpush1.xpose.msra.mxu0 0.0
    %679 = vmatprep.subr.mxu0 0.0
    %680 = vmatpush1.xpose.msra.mxu0 0.0
    %681 = vmatprep.subr.mxu0 0.0
    %682 = vmatpush1.xpose.msra.mxu0 0.0
    %683 = vmatprep.subr.mxu0 0.0
    %684 = vmatpush1.xpose.msra.mxu0 0.0
    %685 = vmatprep.subr.mxu0 0.0
    %686 = vmatpush1.xpose.msra.mxu0 0.0
    %687 = vmatprep.subr.mxu0 0.0
    %688 = vmatpush1.xpose.msra.mxu0 0.0
    %689 = vmatprep.subr.mxu0 0.0
    %690 = vmatpush1.xpose.msra.mxu0 0.0
    %691 = vmatprep.subr.mxu0 0.0
    %692 = vmatpush1.xpose.msra.mxu0 0.0
    %693 = vmatprep.subr.mxu0 0.0
    %694 = vmatpush1.xpose.msra.mxu0 0.0
    %695 = vmatprep.subr.mxu0 0.0
    %696 = vmatpush1.xpose.msra.mxu0 0.0
    %697 = vmatprep.subr.mxu0 0.0
    %698 = vmatpush1.xpose.msra.mxu0 0.0
    %699 = vmatprep.subr.mxu0 0.0
    %700 = vmatpush1.xpose.msra.mxu0 0.0
    %701 = vmatprep.subr.mxu0 0.0
    %702 = vmatpush1.xpose.msra.mxu0 0.0
    %703 = vmatprep.subr.mxu0 0.0
    %704 = vmatpush1.xpose.msra.mxu0 0.0
    %705 = vmatprep.subr.mxu0 0.0
    %706 = vmatpush1.xpose.msra.mxu0 0.0
    %707 = vmatprep.subr.mxu0 0.0
    %708 = vmatpush1.xpose.msra.mxu0 0.0
    %709 = vmatprep.subr.mxu0 0.0
    %710 = vmatpush1.xpose.msra.mxu0 0.0
    %711 = vmatprep.subr.mxu0 0.0
    %712 = vmatpush1.xpose.msra.mxu0 0.0
    %713 = vmatprep.subr.mxu0 0.0
    %714 = vmatpush1.xpose.msra.mxu0 0.0
    %715 = vmatprep.subr.mxu0 0.0
    %716 = vmatpush1.xpose.msra.mxu0 0.0
    %717 = vmatprep.subr.mxu0 0.0
    %718 = vmatpush1.xpose.msra.mxu0 0.0
    %719 = vmatprep.subr.mxu0 0.0
    %720 = vmatpush1.xpose.msra.mxu0 0.0
    %721 = vmatprep.subr.mxu0 0.0
    %722 = vmatpush1.xpose.msra.mxu0 0.0
    %723 = vmatprep.mubr.f32.mxu0 0.0
    %724 = vmatmul.mubr.f32.gmra.mrb[0].mxu0 %v655
    %v725 = vpop.f32.mrb[0].mxu0
    %v726 = vadd.f32 0.0, %v725
    %v727 = vpop.f32.mrb[0].mxu0
    %728 = vdwg.mxu0
    %v729 = vsel %vm159, %v726, -inf
    %730 = vmax.xlane.f32.xlu0 %v729
    %v731 = vpop.xlane.xlu0 %730
    %v732 = vsub.f32 %v726, %v731
    %v733 = vmul.f32 %v732, 1.442695
    %v734 = vpow.pop %v733
    %v735 = vsel %vm159, %v734, 0.0
    %736 = vadd.xlane.f32.xlu0 %v735
    %v737 = vpop.xlane.xlu0 %736
    %v738 = vrcp.pop %v737
    %v739 = vmul.f32 %v734, %v738
    %740 = vrot.lane.b32.xlu0 %v148, 40
    %v741 = vpop.permute.xlu0 %740
    %v744 = vsel %vm159, %v739, 0
    %746 = vmatprep.subr.mxu0 0.0
    %747 = vmatpush1.msra.mxu0 %v741
    %748 = vmatprep.subr.mxu0 0.0
    %749 = vmatpush1.msra.mxu0 0.0
    %750 = vmatprep.subr.mxu0 0.0
    %751 = vmatpush1.msra.mxu0 0.0
    %752 = vmatprep.subr.mxu0 0.0
    %753 = vmatpush1.msra.mxu0 0.0
    %754 = vmatprep.subr.mxu0 0.0
    %755 = vmatpush1.msra.mxu0 0.0
    %756 = vmatprep.subr.mxu0 0.0
    %757 = vmatpush1.msra.mxu0 0.0
    %758 = vmatprep.subr.mxu0 0.0
    %759 = vmatpush1.msra.mxu0 0.0
    %760 = vmatprep.subr.mxu0 0.0
    %761 = vmatpush1.msra.mxu0 0.0
    %762 = vmatprep.subr.mxu0 0.0
    %763 = vmatpush1.msra.mxu0 0.0
    %764 = vmatprep.subr.mxu0 0.0
    %765 = vmatpush1.msra.mxu0 0.0
    %766 = vmatprep.subr.mxu0 0.0
    %767 = vmatpush1.msra.mxu0 0.0
    %768 = vmatprep.subr.mxu0 0.0
    %769 = vmatpush1.msra.mxu0 0.0
    %770 = vmatprep.subr.mxu0 0.0
    %771 = vmatpush1.msra.mxu0 0.0
    %772 = vmatprep.subr.mxu0 0.0
    %773 = vmatpush1.msra.mxu0 0.0
    %774 = vmatprep.subr.mxu0 0.0
    %775 = vmatpush1.msra.mxu0 0.0
    %776 = vmatprep.subr.mxu0 0.0
    %777 = vmatpush1.msra.mxu0 0.0
    %778 = vmatprep.subr.mxu0 0.0
    %779 = vmatpush1.msra.mxu0 0.0
    %780 = vmatprep.subr.mxu0 0.0
    %781 = vmatpush1.msra.mxu0 0.0
    %782 = vmatprep.subr.mxu0 0.0
    %783 = vmatpush1.msra.mxu0 0.0
    %784 = vmatprep.subr.mxu0 0.0
    %785 = vmatpush1.msra.mxu0 0.0
    %786 = vmatprep.subr.mxu0 0.0
    %787 = vmatpush1.msra.mxu0 0.0
    %788 = vmatprep.subr.mxu0 0.0
    %789 = vmatpush1.msra.mxu0 0.0
    %790 = vmatprep.subr.mxu0 0.0
    %791 = vmatpush1.msra.mxu0 0.0
    %792 = vmatprep.subr.mxu0 0.0
    %793 = vmatpush1.msra.mxu0 0.0
    %794 = vmatprep.subr.mxu0 0.0
    %795 = vmatpush1.msra.mxu0 0.0
    %796 = vmatprep.subr.mxu0 0.0
    %797 = vmatpush1.msra.mxu0 0.0
    %798 = vmatprep.subr.mxu0 0.0
    %799 = vmatpush1.msra.mxu0 0.0
    %800 = vmatprep.subr.mxu0 0.0
    %801 = vmatpush1.msra.mxu0 0.0
    %802 = vmatprep.subr.mxu0 0.0
    %803 = vmatpush1.msra.mxu0 0.0
    %804 = vmatprep.subr.mxu0 0.0
    %805 = vmatpush1.msra.mxu0 0.0
    %806 = vmatprep.subr.mxu0 0.0
    %807 = vmatpush1.msra.mxu0 0.0
    %808 = vmatprep.subr.mxu0 0.0
    %809 = vmatpush1.msra.mxu0 0.0
    %810 = vmatprep.mubr.f32.mxu0 0.0
    %811 = vmatmul.mubr.f32.gmra.mrb[0].mxu0 %v744
    %v812 = vpop.f32.mrb[0].mxu0
    %v813 = vadd.f32 0.0, %v812
    %v814 = vpop.f32.mrb[0].mxu0
    %815 = vdwg.mxu0
    %817 = vrot.lane.b32.xlu0 %v483, 8
    %v818 = vpop.permute.xlu0 %817
    %821 = vrot.lane.b32.xlu0 %v648, 16
    %v822 = vpop.permute.xlu0 %821
    %825 = vrot.lane.b32.xlu0 %v813, 24
    %v826 = vpop.permute.xlu0 %825
    %v828 = vsel %vm159, %v318, %v818
    %vm829 = vcmask 130048
    %v830 = vsel %vm829, %v828, %v822
    %vm831 = vcmask 195584
    %v832 = vsel %vm831, %v830, %v826
    %834 = vrot.lane.b32.xlu0 %v153, 96
    %v835 = vpop.permute.xlu0 %834
    %v836 = vsel %vm159, %v153, 0
    %v838 = vsel %vm159, %v835, 0
    %840 = vmatprep.subr.mxu0 0.0
    %841 = vmatpush1.xpose.msra.mxu0 %v838
    %842 = vmatprep.subr.mxu0 0.0
    %843 = vmatpush1.xpose.msra.mxu0 0.0
    %844 = vmatprep.subr.mxu0 0.0
    %845 = vmatpush1.xpose.msra.mxu0 0.0
    %846 = vmatprep.subr.mxu0 0.0
    %847 = vmatpush1.xpose.msra.mxu0 0.0
    %848 = vmatprep.subr.mxu0 0.0
    %849 = vmatpush1.xpose.msra.mxu0 0.0
    %850 = vmatprep.subr.mxu0 0.0
    %851 = vmatpush1.xpose.msra.mxu0 0.0
    %852 = vmatprep.subr.mxu0 0.0
    %853 = vmatpush1.xpose.msra.mxu0 0.0
    %854 = vmatprep.subr.mxu0 0.0
    %855 = vmatpush1.xpose.msra.mxu0 0.0
    %856 = vmatprep.subr.mxu0 0.0
    %857 = vmatpush1.xpose.msra.mxu0 0.0
    %858 = vmatprep.subr.mxu0 0.0
    %859 = vmatpush1.xpose.msra.mxu0 0.0
    %860 = vmatprep.subr.mxu0 0.0
    %861 = vmatpush1.xpose.msra.mxu0 0.0
    %862 = vmatprep.subr.mxu0 0.0
    %863 = vmatpush1.xpose.msra.mxu0 0.0
    %864 = vmatprep.subr.mxu0 0.0
    %865 = vmatpush1.xpose.msra.mxu0 0.0
    %866 = vmatprep.subr.mxu0 0.0
    %867 = vmatpush1.xpose.msra.mxu0 0.0
    %868 = vmatprep.subr.mxu0 0.0
    %869 = vmatpush1.xpose.msra.mxu0 0.0
    %870 = vmatprep.subr.mxu0 0.0
    %871 = vmatpush1.xpose.msra.mxu0 0.0
    %872 = vmatprep.subr.mxu0 0.0
    %873 = vmatpush1.xpose.msra.mxu0 0.0
    %874 = vmatprep.subr.mxu0 0.0
    %875 = vmatpush1.xpose.msra.mxu0 0.0
    %876 = vmatprep.subr.mxu0 0.0
    %877 = vmatpush1.xpose.msra.mxu0 0.0
    %878 = vmatprep.subr.mxu0 0.0
    %879 = vmatpush1.xpose.msra.mxu0 0.0
    %880 = vmatprep.subr.mxu0 0.0
    %881 = vmatpush1.xpose.msra.mxu0 0.0
    %882 = vmatprep.subr.mxu0 0.0
    %883 = vmatpush1.xpose.msra.mxu0 0.0
    %884 = vmatprep.subr.mxu0 0.0
    %885 = vmatpush1.xpose.msra.mxu0 0.0
    %886 = vmatprep.subr.mxu0 0.0
    %887 = vmatpush1.xpose.msra.mxu0 0.0
    %888 = vmatprep.subr.mxu0 0.0
    %889 = vmatpush1.xpose.msra.mxu0 0.0
    %890 = vmatprep.subr.mxu0 0.0
    %891 = vmatpush1.xpose.msra.mxu0 0.0
    %892 = vmatprep.subr.mxu0 0.0
    %893 = vmatpush1.xpose.msra.mxu0 0.0
    %894 = vmatprep.subr.mxu0 0.0
    %895 = vmatpush1.xpose.msra.mxu0 0.0
    %896 = vmatprep.subr.mxu0 0.0
    %897 = vmatpush1.xpose.msra.mxu0 0.0
    %898 = vmatprep.subr.mxu0 0.0
    %899 = vmatpush1.xpose.msra.mxu0 0.0
    %900 = vmatprep.subr.mxu0 0.0
    %901 = vmatpush1.xpose.msra.mxu0 0.0
    %902 = vmatprep.subr.mxu0 0.0
    %903 = vmatpush1.xpose.msra.mxu0 0.0
    %904 = vmatprep.mubr.f32.mxu0 0.0
    %905 = vmatmul.mubr.f32.gmra.mrb[0].mxu0 %v836
    %v906 = vpop.f32.mrb[0].mxu0
    %v907 = vadd.f32 0.0, %v906
    %v908 = vpop.f32.mrb[0].mxu0
    %909 = vdwg.mxu0
    %v910 = vsel %vm159, %v907, -inf
    %911 = vmax.xlane.f32.xlu0 %v910
    %v912 = vpop.xlane.xlu0 %911
    %v913 = vsub.f32 %v907, %v912
    %v914 = vmul.f32 %v913, 1.442695
    %v915 = vpow.pop %v914
    %v916 = vsel %vm159, %v915, 0.0
    %917 = vadd.xlane.f32.xlu0 %v916
    %v918 = vpop.xlane.xlu0 %917
    %v919 = vrcp.pop %v918
    %v920 = vmul.f32 %v915, %v919
    %921 = vrot.lane.b32.xlu0 %v153, 64
    %v922 = vpop.permute.xlu0 %921
    %v925 = vsel %vm159, %v920, 0
    %927 = vmatprep.subr.mxu0 0.0
    %928 = vmatpush1.msra.mxu0 %v922
    %929 = vmatprep.subr.mxu0 0.0
    %930 = vmatpush1.msra.mxu0 0.0
    %931 = vmatprep.subr.mxu0 0.0
    %932 = vmatpush1.msra.mxu0 0.0
    %933 = vmatprep.subr.mxu0 0.0
    %934 = vmatpush1.msra.mxu0 0.0
    %935 = vmatprep.subr.mxu0 0.0
    %936 = vmatpush1.msra.mxu0 0.0
    %937 = vmatprep.subr.mxu0 0.0
    %938 = vmatpush1.msra.mxu0 0.0
    %939 = vmatprep.subr.mxu0 0.0
    %940 = vmatpush1.msra.mxu0 0.0
    %941 = vmatprep.subr.mxu0 0.0
    %942 = vmatpush1.msra.mxu0 0.0
    %943 = vmatprep.subr.mxu0 0.0
    %944 = vmatpush1.msra.mxu0 0.0
    %945 = vmatprep.subr.mxu0 0.0
    %946 = vmatpush1.msra.mxu0 0.0
    %947 = vmatprep.subr.mxu0 0.0
    %948 = vmatpush1.msra.mxu0 0.0
    %949 = vmatprep.subr.mxu0 0.0
    %950 = vmatpush1.msra.mxu0 0.0
    %951 = vmatprep.subr.mxu0 0.0
    %952 = vmatpush1.msra.mxu0 0.0
    %953 = vmatprep.subr.mxu0 0.0
    %954 = vmatpush1.msra.mxu0 0.0
    %955 = vmatprep.subr.mxu0 0.0
    %956 = vmatpush1.msra.mxu0 0.0
    %957 = vmatprep.subr.mxu0 0.0
    %958 = vmatpush1.msra.mxu0 0.0
    %959 = vmatprep.subr.mxu0 0.0
    %960 = vmatpush1.msra.mxu0 0.0
    %961 = vmatprep.subr.mxu0 0.0
    %962 = vmatpush1.msra.mxu0 0.0
    %963 = vmatprep.subr.mxu0 0.0
    %964 = vmatpush1.msra.mxu0 0.0
    %965 = vmatprep.subr.mxu0 0.0
    %966 = vmatpush1.msra.mxu0 0.0
    %967 = vmatprep.subr.mxu0 0.0
    %968 = vmatpush1.msra.mxu0 0.0
    %969 = vmatprep.subr.mxu0 0.0
    %970 = vmatpush1.msra.mxu0 0.0
    %971 = vmatprep.subr.mxu0 0.0
    %972 = vmatpush1.msra.mxu0 0.0
    %973 = vmatprep.subr.mxu0 0.0
    %974 = vmatpush1.msra.mxu0 0.0
    %975 = vmatprep.subr.mxu0 0.0
    %976 = vmatpush1.msra.mxu0 0.0
    %977 = vmatprep.subr.mxu0 0.0
    %978 = vmatpush1.msra.mxu0 0.0
    %979 = vmatprep.subr.mxu0 0.0
    %980 = vmatpush1.msra.mxu0 0.0
    %981 = vmatprep.subr.mxu0 0.0
    %982 = vmatpush1.msra.mxu0 0.0
    %983 = vmatprep.subr.mxu0 0.0
    %984 = vmatpush1.msra.mxu0 0.0
    %985 = vmatprep.subr.mxu0 0.0
    %986 = vmatpush1.msra.mxu0 0.0
    %987 = vmatprep.subr.mxu0 0.0
    %988 = vmatpush1.msra.mxu0 0.0
    %989 = vmatprep.subr.mxu0 0.0
    %990 = vmatpush1.msra.mxu0 0.0
    %991 = vmatprep.mubr.f32.mxu0 0.0
    %992 = vmatmul.mubr.f32.gmra.mrb[0].mxu0 %v925
    %v993 = vpop.f32.mrb[0].mxu0
    %v994 = vadd.f32 0.0, %v993
    %v995 = vpop.f32.mrb[0].mxu0
    %996 = vdwg.mxu0
    %997 = vrot.lane.b32.xlu0 %v153, 120
    %v998 = vpop.permute.xlu0 %997
    %999 = vrot.lane.b32.xlu0 %v153, 88
    %v1000 = vpop.permute.xlu0 %999
    %v1001 = vsel %vm159, %v998, 0
    %v1003 = vsel %vm159, %v1000, 0
    %1005 = vmatprep.subr.mxu0 0.0
    %1006 = vmatpush1.xpose.msra.mxu0 %v1003
    %1007 = vmatprep.subr.mxu0 0.0
    %1008 = vmatpush1.xpose.msra.mxu0 0.0
    %1009 = vmatprep.subr.mxu0 0.0
    %1010 = vmatpush1.xpose.msra.mxu0 0.0
    %1011 = vmatprep.subr.mxu0 0.0
    %1012 = vmatpush1.xpose.msra.mxu0 0.0
    %1013 = vmatprep.subr.mxu0 0.0
    %1014 = vmatpush1.xpose.msra.mxu0 0.0
    %1015 = vmatprep.subr.mxu0 0.0
    %1016 = vmatpush1.xpose.msra.mxu0 0.0
    %1017 = vmatprep.subr.mxu0 0.0
    %1018 = vmatpush1.xpose.msra.mxu0 0.0
    %1019 = vmatprep.subr.mxu0 0.0
    %1020 = vmatpush1.xpose.msra.mxu0 0.0
    %1021 = vmatprep.subr.mxu0 0.0
    %1022 = vmatpush1.xpose.msra.mxu0 0.0
    %1023 = vmatprep.subr.mxu0 0.0
    %1024 = vmatpush1.xpose.msra.mxu0 0.0
    %1025 = vmatprep.subr.mxu0 0.0
    %1026 = vmatpush1.xpose.msra.mxu0 0.0
    %1027 = vmatprep.subr.mxu0 0.0
    %1028 = vmatpush1.xpose.msra.mxu0 0.0
    %1029 = vmatprep.subr.mxu0 0.0
    %1030 = vmatpush1.xpose.msra.mxu0 0.0
    %1031 = vmatprep.subr.mxu0 0.0
    %1032 = vmatpush1.xpose.msra.mxu0 0.0
    %1033 = vmatprep.subr.mxu0 0.0
    %1034 = vmatpush1.xpose.msra.mxu0 0.0
    %1035 = vmatprep.subr.mxu0 0.0
    %1036 = vmatpush1.xpose.msra.mxu0 0.0
    %1037 = vmatprep.subr.mxu0 0.0
    %1038 = vmatpush1.xpose.msra.mxu0 0.0
    %1039 = vmatprep.subr.mxu0 0.0
    %1040 = vmatpush1.xpose.msra.mxu0 0.0
    %1041 = vmatprep.subr.mxu0 0.0
    %1042 = vmatpush1.xpose.msra.mxu0 0.0
    %1043 = vmatprep.subr.mxu0 0.0
    %1044 = vmatpush1.xpose.msra.mxu0 0.0
    %1045 = vmatprep.subr.mxu0 0.0
    %1046 = vmatpush1.xpose.msra.mxu0 0.0
    %1047 = vmatprep.subr.mxu0 0.0
    %1048 = vmatpush1.xpose.msra.mxu0 0.0
    %1049 = vmatprep.subr.mxu0 0.0
    %1050 = vmatpush1.xpose.msra.mxu0 0.0
    %1051 = vmatprep.subr.mxu0 0.0
    %1052 = vmatpush1.xpose.msra.mxu0 0.0
    %1053 = vmatprep.subr.mxu0 0.0
    %1054 = vmatpush1.xpose.msra.mxu0 0.0
    %1055 = vmatprep.subr.mxu0 0.0
    %1056 = vmatpush1.xpose.msra.mxu0 0.0
    %1057 = vmatprep.subr.mxu0 0.0
    %1058 = vmatpush1.xpose.msra.mxu0 0.0
    %1059 = vmatprep.subr.mxu0 0.0
    %1060 = vmatpush1.xpose.msra.mxu0 0.0
    %1061 = vmatprep.subr.mxu0 0.0
    %1062 = vmatpush1.xpose.msra.mxu0 0.0
    %1063 = vmatprep.subr.mxu0 0.0
    %1064 = vmatpush1.xpose.msra.mxu0 0.0
    %1065 = vmatprep.subr.mxu0 0.0
    %1066 = vmatpush1.xpose.msra.mxu0 0.0
    %1067 = vmatprep.subr.mxu0 0.0
    %1068 = vmatpush1.xpose.msra.mxu0 0.0
    %1069 = vmatprep.mubr.f32.mxu0 0.0
    %1070 = vmatmul.mubr.f32.gmra.mrb[0].mxu0 %v1001
    %v1071 = vpop.f32.mrb[0].mxu0
    %v1072 = vadd.f32 0.0, %v1071
    %v1073 = vpop.f32.mrb[0].mxu0
    %1074 = vdwg.mxu0
    %v1075 = vsel %vm159, %v1072, -inf
    %1076 = vmax.xlane.f32.xlu0 %v1075
    %v1077 = vpop.xlane.xlu0 %1076
    %v1078 = vsub.f32 %v1072, %v1077
    %v1079 = vmul.f32 %v1078, 1.442695
    %v1080 = vpow.pop %v1079
    %v1081 = vsel %vm159, %v1080, 0.0
    %1082 = vadd.xlane.f32.xlu0 %v1081
    %v1083 = vpop.xlane.xlu0 %1082
    %v1084 = vrcp.pop %v1083
    %v1085 = vmul.f32 %v1080, %v1084
    %1086 = vrot.lane.b32.xlu0 %v153, 56
    %v1087 = vpop.permute.xlu0 %1086
    %v1090 = vsel %vm159, %v1085, 0
    %1092 = vmatprep.subr.mxu0 0.0
    %1093 = vmatpush1.msra.mxu0 %v1087
    %1094 = vmatprep.subr.mxu0 0.0
    %1095 = vmatpush1.msra.mxu0 0.0
    %1096 = vmatprep.subr.mxu0 0.0
    %1097 = vmatpush1.msra.mxu0 0.0
    %1098 = vmatprep.subr.mxu0 0.0
    %1099 = vmatpush1.msra.mxu0 0.0
    %1100 = vmatprep.subr.mxu0 0.0
    %1101 = vmatpush1.msra.mxu0 0.0
    %1102 = vmatprep.subr.mxu0 0.0
    %1103 = vmatpush1.msra.mxu0 0.0
    %1104 = vmatprep.subr.mxu0 0.0
    %1105 = vmatpush1.msra.mxu0 0.0
    %1106 = vmatprep.subr.mxu0 0.0
    %1107 = vmatpush1.msra.mxu0 0.0
    %1108 = vmatprep.subr.mxu0 0.0
    %1109 = vmatpush1.msra.mxu0 0.0
    %1110 = vmatprep.subr.mxu0 0.0
    %1111 = vmatpush1.msra.mxu0 0.0
    %1112 = vmatprep.subr.mxu0 0.0
    %1113 = vmatpush1.msra.mxu0 0.0
    %1114 = vmatprep.subr.mxu0 0.0
    %1115 = vmatpush1.msra.mxu0 0.0
    %1116 = vmatprep.subr.mxu0 0.0
    %1117 = vmatpush1.msra.mxu0 0.0
    %1118 = vmatprep.subr.mxu0 0.0
    %1119 = vmatpush1.msra.mxu0 0.0
    %1120 = vmatprep.subr.mxu0 0.0
    %1121 = vmatpush1.msra.mxu0 0.0
    %1122 = vmatprep.subr.mxu0 0.0
    %1123 = vmatpush1.msra.mxu0 0.0
    %1124 = vmatprep.subr.mxu0 0.0
    %1125 = vmatpush1.msra.mxu0 0.0
    %1126 = vmatprep.subr.mxu0 0.0
    %1127 = vmatpush1.msra.mxu0 0.0
    %1128 = vmatprep.subr.mxu0 0.0
    %1129 = vmatpush1.msra.mxu0 0.0
    %1130 = vmatprep.subr.mxu0 0.0
    %1131 = vmatpush1.msra.mxu0 0.0
    %1132 = vmatprep.subr.mxu0 0.0
    %1133 = vmatpush1.msra.mxu0 0.0
    %1134 = vmatprep.subr.mxu0 0.0
    %1135 = vmatpush1.msra.mxu0 0.0
    %1136 = vmatprep.subr.mxu0 0.0
    %1137 = vmatpush1.msra.mxu0 0.0
    %1138 = vmatprep.subr.mxu0 0.0
    %1139 = vmatpush1.msra.mxu0 0.0
    %1140 = vmatprep.subr.mxu0 0.0
    %1141 = vmatpush1.msra.mxu0 0.0
    %1142 = vmatprep.subr.mxu0 0.0
    %1143 = vmatpush1.msra.mxu0 0.0
    %1144 = vmatprep.subr.mxu0 0.0
    %1145 = vmatpush1.msra.mxu0 0.0
    %1146 = vmatprep.subr.mxu0 0.0
    %1147 = vmatpush1.msra.mxu0 0.0
    %1148 = vmatprep.subr.mxu0 0.0
    %1149 = vmatpush1.msra.mxu0 0.0
    %1150 = vmatprep.subr.mxu0 0.0
    %1151 = vmatpush1.msra.mxu0 0.0
    %1152 = vmatprep.subr.mxu0 0.0
    %1153 = vmatpush1.msra.mxu0 0.0
    %1154 = vmatprep.subr.mxu0 0.0
    %1155 = vmatpush1.msra.mxu0 0.0
    %1156 = vmatprep.mubr.f32.mxu0 0.0
    %1157 = vmatmul.mubr.f32.gmra.mrb[0].mxu0 %v1090
    %v1158 = vpop.f32.mrb[0].mxu0
    %v1159 = vadd.f32 0.0, %v1158
    %v1160 = vpop.f32.mrb[0].mxu0
    %1161 = vdwg.mxu0
    %1162 = vrot.lane.b32.xlu0 %v153, 112
    %v1163 = vpop.permute.xlu0 %1162
    %1164 = vrot.lane.b32.xlu0 %v153, 80
    %v1165 = vpop.permute.xlu0 %1164
    %v1166 = vsel %vm159, %v1163, 0
    %v1168 = vsel %vm159, %v1165, 0
    %1170 = vmatprep.subr.mxu0 0.0
    %1171 = vmatpush1.xpose.msra.mxu0 %v1168
    %1172 = vmatprep.subr.mxu0 0.0
    %1173 = vmatpush1.xpose.msra.mxu0 0.0
    %1174 = vmatprep.subr.mxu0 0.0
    %1175 = vmatpush1.xpose.msra.mxu0 0.0
    %1176 = vmatprep.subr.mxu0 0.0
    %1177 = vmatpush1.xpose.msra.mxu0 0.0
    %1178 = vmatprep.subr.mxu0 0.0
    %1179 = vmatpush1.xpose.msra.mxu0 0.0
    %1180 = vmatprep.subr.mxu0 0.0
    %1181 = vmatpush1.xpose.msra.mxu0 0.0
    %1182 = vmatprep.subr.mxu0 0.0
    %1183 = vmatpush1.xpose.msra.mxu0 0.0
    %1184 = vmatprep.subr.mxu0 0.0
    %1185 = vmatpush1.xpose.msra.mxu0 0.0
    %1186 = vmatprep.subr.mxu0 0.0
    %1187 = vmatpush1.xpose.msra.mxu0 0.0
    %1188 = vmatprep.subr.mxu0 0.0
    %1189 = vmatpush1.xpose.msra.mxu0 0.0
    %1190 = vmatprep.subr.mxu0 0.0
    %1191 = vmatpush1.xpose.msra.mxu0 0.0
    %1192 = vmatprep.subr.mxu0 0.0
    %1193 = vmatpush1.xpose.msra.mxu0 0.0
    %1194 = vmatprep.subr.mxu0 0.0
    %1195 = vmatpush1.xpose.msra.mxu0 0.0
    %1196 = vmatprep.subr.mxu0 0.0
    %1197 = vmatpush1.xpose.msra.mxu0 0.0
    %1198 = vmatprep.subr.mxu0 0.0
    %1199 = vmatpush1.xpose.msra.mxu0 0.0
    %1200 = vmatprep.subr.mxu0 0.0
    %1201 = vmatpush1.xpose.msra.mxu0 0.0
    %1202 = vmatprep.subr.mxu0 0.0
    %1203 = vmatpush1.xpose.msra.mxu0 0.0
    %1204 = vmatprep.subr.mxu0 0.0
    %1205 = vmatpush1.xpose.msra.mxu0 0.0
    %1206 = vmatprep.subr.mxu0 0.0
    %1207 = vmatpush1.xpose.msra.mxu0 0.0
    %1208 = vmatprep.subr.mxu0 0.0
    %1209 = vmatpush1.xpose.msra.mxu0 0.0
    %1210 = vmatprep.subr.mxu0 0.0
    %1211 = vmatpush1.xpose.msra.mxu0 0.0
    %1212 = vmatprep.subr.mxu0 0.0
    %1213 = vmatpush1.xpose.msra.mxu0 0.0
    %1214 = vmatprep.subr.mxu0 0.0
    %1215 = vmatpush1.xpose.msra.mxu0 0.0
    %1216 = vmatprep.subr.mxu0 0.0
    %1217 = vmatpush1.xpose.msra.mxu0 0.0
    %1218 = vmatprep.subr.mxu0 0.0
    %1219 = vmatpush1.xpose.msra.mxu0 0.0
    %1220 = vmatprep.subr.mxu0 0.0
    %1221 = vmatpush1.xpose.msra.mxu0 0.0
    %1222 = vmatprep.subr.mxu0 0.0
    %1223 = vmatpush1.xpose.msra.mxu0 0.0
    %1224 = vmatprep.subr.mxu0 0.0
    %1225 = vmatpush1.xpose.msra.mxu0 0.0
    %1226 = vmatprep.subr.mxu0 0.0
    %1227 = vmatpush1.xpose.msra.mxu0 0.0
    %1228 = vmatprep.subr.mxu0 0.0
    %1229 = vmatpush1.xpose.msra.mxu0 0.0
    %1230 = vmatprep.subr.mxu0 0.0
    %1231 = vmatpush1.xpose.msra.mxu0 0.0
    %1232 = vmatprep.subr.mxu0 0.0
    %1233 = vmatpush1.xpose.msra.mxu0 0.0
    %1234 = vmatprep.mubr.f32.mxu0 0.0
    %1235 = vmatmul.mubr.f32.gmra.mrb[0].mxu0 %v1166
    %v1236 = vpop.f32.mrb[0].mxu0
    %v1237 = vadd.f32 0.0, %v1236
    %v1238 = vpop.f32.mrb[0].mxu0
    %1239 = vdwg.mxu0
    %v1240 = vsel %vm159, %v1237, -inf
    %1241 = vmax.xlane.f32.xlu0 %v1240
    %v1242 = vpop.xlane.xlu0 %1241
    %v1243 = vsub.f32 %v1237, %v1242
    %v1244 = vmul.f32 %v1243, 1.442695
    %v1245 = vpow.pop %v1244
    %v1246 = vsel %vm159, %v1245, 0.0
    %1247 = vadd.xlane.f32.xlu0 %v1246
    %v1248 = vpop.xlane.xlu0 %1247
    %v1249 = vrcp.pop %v1248
    %v1250 = vmul.f32 %v1245, %v1249
    %1251 = vrot.lane.b32.xlu0 %v153, 48
    %v1252 = vpop.permute.xlu0 %1251
    %v1255 = vsel %vm159, %v1250, 0
    %1257 = vmatprep.subr.mxu0 0.0
    %1258 = vmatpush1.msra.mxu0 %v1252
    %1259 = vmatprep.subr.mxu0 0.0
    %1260 = vmatpush1.msra.mxu0 0.0
    %1261 = vmatprep.subr.mxu0 0.0
    %1262 = vmatpush1.msra.mxu0 0.0
    %1263 = vmatprep.subr.mxu0 0.0
    %1264 = vmatpush1.msra.mxu0 0.0
    %1265 = vmatprep.subr.mxu0 0.0
    %1266 = vmatpush1.msra.mxu0 0.0
    %1267 = vmatprep.subr.mxu0 0.0
    %1268 = vmatpush1.msra.mxu0 0.0
    %1269 = vmatprep.subr.mxu0 0.0
    %1270 = vmatpush1.msra.mxu0 0.0
    %1271 = vmatprep.subr.mxu0 0.0
    %1272 = vmatpush1.msra.mxu0 0.0
    %1273 = vmatprep.subr.mxu0 0.0
    %1274 = vmatpush1.msra.mxu0 0.0
    %1275 = vmatprep.subr.mxu0 0.0
    %1276 = vmatpush1.msra.mxu0 0.0
    %1277 = vmatprep.subr.mxu0 0.0
    %1278 = vmatpush1.msra.mxu0 0.0
    %1279 = vmatprep.subr.mxu0 0.0
    %1280 = vmatpush1.msra.mxu0 0.0
    %1281 = vmatprep.subr.mxu0 0.0
    %1282 = vmatpush1.msra.mxu0 0.0
    %1283 = vmatprep.subr.mxu0 0.0
    %1284 = vmatpush1.msra.mxu0 0.0
    %1285 = vmatprep.subr.mxu0 0.0
    %1286 = vmatpush1.msra.mxu0 0.0
    %1287 = vmatprep.subr.mxu0 0.0
    %1288 = vmatpush1.msra.mxu0 0.0
    %1289 = vmatprep.subr.mxu0 0.0
    %1290 = vmatpush1.msra.mxu0 0.0
    %1291 = vmatprep.subr.mxu0 0.0
    %1292 = vmatpush1.msra.mxu0 0.0
    %1293 = vmatprep.subr.mxu0 0.0
    %1294 = vmatpush1.msra.mxu0 0.0
    %1295 = vmatprep.subr.mxu0 0.0
    %1296 = vmatpush1.msra.mxu0 0.0
    %1297 = vmatprep.subr.mxu0 0.0
    %1298 = vmatpush1.msra.mxu0 0.0
    %1299 = vmatprep.subr.mxu0 0.0
    %1300 = vmatpush1.msra.mxu0 0.0
    %1301 = vmatprep.subr.mxu0 0.0
    %1302 = vmatpush1.msra.mxu0 0.0
    %1303 = vmatprep.subr.mxu0 0.0
    %1304 = vmatpush1.msra.mxu0 0.0
    %1305 = vmatprep.subr.mxu0 0.0
    %1306 = vmatpush1.msra.mxu0 0.0
    %1307 = vmatprep.subr.mxu0 0.0
    %1308 = vmatpush1.msra.mxu0 0.0
    %1309 = vmatprep.subr.mxu0 0.0
    %1310 = vmatpush1.msra.mxu0 0.0
    %1311 = vmatprep.subr.mxu0 0.0
    %1312 = vmatpush1.msra.mxu0 0.0
    %1313 = vmatprep.subr.mxu0 0.0
    %1314 = vmatpush1.msra.mxu0 0.0
    %1315 = vmatprep.subr.mxu0 0.0
    %1316 = vmatpush1.msra.mxu0 0.0
    %1317 = vmatprep.subr.mxu0 0.0
    %1318 = vmatpush1.msra.mxu0 0.0
    %1319 = vmatprep.subr.mxu0 0.0
    %1320 = vmatpush1.msra.mxu0 0.0
    %1321 = vmatprep.mubr.f32.mxu0 0.0
    %1322 = vmatmul.mubr.f32.gmra.mrb[0].mxu0 %v1255
    %v1323 = vpop.f32.mrb[0].mxu0
    %v1324 = vadd.f32 0.0, %v1323
    %v1325 = vpop.f32.mrb[0].mxu0
    %1326 = vdwg.mxu0
    %1327 = vrot.lane.b32.xlu0 %v153, 104
    %v1328 = vpop.permute.xlu0 %1327
    %1329 = vrot.lane.b32.xlu0 %v153, 72
    %v1330 = vpop.permute.xlu0 %1329
    %v1331 = vsel %vm159, %v1328, 0
    %v1333 = vsel %vm159, %v1330, 0
    %1335 = vmatprep.subr.mxu0 0.0
    %1336 = vmatpush1.xpose.msra.mxu0 %v1333
    %1337 = vmatprep.subr.mxu0 0.0
    %1338 = vmatpush1.xpose.msra.mxu0 0.0
    %1339 = vmatprep.subr.mxu0 0.0
    %1340 = vmatpush1.xpose.msra.mxu0 0.0
    %1341 = vmatprep.subr.mxu0 0.0
    %1342 = vmatpush1.xpose.msra.mxu0 0.0
    %1343 = vmatprep.subr.mxu0 0.0
    %1344 = vmatpush1.xpose.msra.mxu0 0.0
    %1345 = vmatprep.subr.mxu0 0.0
    %1346 = vmatpush1.xpose.msra.mxu0 0.0
    %1347 = vmatprep.subr.mxu0 0.0
    %1348 = vmatpush1.xpose.msra.mxu0 0.0
    %1349 = vmatprep.subr.mxu0 0.0
    %1350 = vmatpush1.xpose.msra.mxu0 0.0
    %1351 = vmatprep.subr.mxu0 0.0
    %1352 = vmatpush1.xpose.msra.mxu0 0.0
    %1353 = vmatprep.subr.mxu0 0.0
    %1354 = vmatpush1.xpose.msra.mxu0 0.0
    %1355 = vmatprep.subr.mxu0 0.0
    %1356 = vmatpush1.xpose.msra.mxu0 0.0
    %1357 = vmatprep.subr.mxu0 0.0
    %1358 = vmatpush1.xpose.msra.mxu0 0.0
    %1359 = vmatprep.subr.mxu0 0.0
    %1360 = vmatpush1.xpose.msra.mxu0 0.0
    %1361 = vmatprep.subr.mxu0 0.0
    %1362 = vmatpush1.xpose.msra.mxu0 0.0
    %1363 = vmatprep.subr.mxu0 0.0
    %1364 = vmatpush1.xpose.msra.mxu0 0.0
    %1365 = vmatprep.subr.mxu0 0.0
    %1366 = vmatpush1.xpose.msra.mxu0 0.0
    %1367 = vmatprep.subr.mxu0 0.0
    %1368 = vmatpush1.xpose.msra.mxu0 0.0
    %1369 = vmatprep.subr.mxu0 0.0
    %1370 = vmatpush1.xpose.msra.mxu0 0.0
    %1371 = vmatprep.subr.mxu0 0.0
    %1372 = vmatpush1.xpose.msra.mxu0 0.0
    %1373 = vmatprep.subr.mxu0 0.0
    %1374 = vmatpush1.xpose.msra.mxu0 0.0
    %1375 = vmatprep.subr.mxu0 0.0
    %1376 = vmatpush1.xpose.msra.mxu0 0.0
    %1377 = vmatprep.subr.mxu0 0.0
    %1378 = vmatpush1.xpose.msra.mxu0 0.0
    %1379 = vmatprep.subr.mxu0 0.0
    %1380 = vmatpush1.xpose.msra.mxu0 0.0
    %1381 = vmatprep.subr.mxu0 0.0
    %1382 = vmatpush1.xpose.msra.mxu0 0.0
    %1383 = vmatprep.subr.mxu0 0.0
    %1384 = vmatpush1.xpose.msra.mxu0 0.0
    %1385 = vmatprep.subr.mxu0 0.0
    %1386 = vmatpush1.xpose.msra.mxu0 0.0
    %1387 = vmatprep.subr.mxu0 0.0
    %1388 = vmatpush1.xpose.msra.mxu0 0.0
    %1389 = vmatprep.subr.mxu0 0.0
    %1390 = vmatpush1.xpose.msra.mxu0 0.0
    %1391 = vmatprep.subr.mxu0 0.0
    %1392 = vmatpush1.xpose.msra.mxu0 0.0
    %1393 = vmatprep.subr.mxu0 0.0
    %1394 = vmatpush1.xpose.msra.mxu0 0.0
    %1395 = vmatprep.subr.mxu0 0.0
    %1396 = vmatpush1.xpose.msra.mxu0 0.0
    %1397 = vmatprep.subr.mxu0 0.0
    %1398 = vmatpush1.xpose.msra.mxu0 0.0
    %1399 = vmatprep.mubr.f32.mxu0 0.0
    %1400 = vmatmul.mubr.f32.gmra.mrb[0].mxu0 %v1331
    %v1401 = vpop.f32.mrb[0].mxu0
    %v1402 = vadd.f32 0.0, %v1401
    %v1403 = vpop.f32.mrb[0].mxu0
    %1404 = vdwg.mxu0
    %v1405 = vsel %vm159, %v1402, -inf
    %1406 = vmax.xlane.f32.xlu0 %v1405
    %v1407 = vpop.xlane.xlu0 %1406
    %v1408 = vsub.f32 %v1402, %v1407
    %v1409 = vmul.f32 %v1408, 1.442695
    %v1410 = vpow.pop %v1409
    %v1411 = vsel %vm159, %v1410, 0.0
    %1412 = vadd.xlane.f32.xlu0 %v1411
    %v1413 = vpop.xlane.xlu0 %1412
    %v1414 = vrcp.pop %v1413
    %v1415 = vmul.f32 %v1410, %v1414
    %1416 = vrot.lane.b32.xlu0 %v153, 40
    %v1417 = vpop.permute.xlu0 %1416
    %v1420 = vsel %vm159, %v1415, 0
    %1422 = vmatprep.subr.mxu0 0.0
    %1423 = vmatpush1.msra.mxu0 %v1417
    %1424 = vmatprep.subr.mxu0 0.0
    %1425 = vmatpush1.msra.mxu0 0.0
    %1426 = vmatprep.subr.mxu0 0.0
    %1427 = vmatpush1.msra.mxu0 0.0
    %1428 = vmatprep.subr.mxu0 0.0
    %1429 = vmatpush1.msra.mxu0 0.0
    %1430 = vmatprep.subr.mxu0 0.0
    %1431 = vmatpush1.msra.mxu0 0.0
    %1432 = vmatprep.subr.mxu0 0.0
    %1433 = vmatpush1.msra.mxu0 0.0
    %1434 = vmatprep.subr.mxu0 0.0
    %1435 = vmatpush1.msra.mxu0 0.0
    %1436 = vmatprep.subr.mxu0 0.0
    %1437 = vmatpush1.msra.mxu0 0.0
    %1438 = vmatprep.subr.mxu0 0.0
    %1439 = vmatpush1.msra.mxu0 0.0
    %1440 = vmatprep.subr.mxu0 0.0
    %1441 = vmatpush1.msra.mxu0 0.0
    %1442 = vmatprep.subr.mxu0 0.0
    %1443 = vmatpush1.msra.mxu0 0.0
    %1444 = vmatprep.subr.mxu0 0.0
    %1445 = vmatpush1.msra.mxu0 0.0
    %1446 = vmatprep.subr.mxu0 0.0
    %1447 = vmatpush1.msra.mxu0 0.0
    %1448 = vmatprep.subr.mxu0 0.0
    %1449 = vmatpush1.msra.mxu0 0.0
    %1450 = vmatprep.subr.mxu0 0.0
    %1451 = vmatpush1.msra.mxu0 0.0
    %1452 = vmatprep.subr.mxu0 0.0
    %1453 = vmatpush1.msra.mxu0 0.0
    %1454 = vmatprep.subr.mxu0 0.0
    %1455 = vmatpush1.msra.mxu0 0.0
    %1456 = vmatprep.subr.mxu0 0.0
    %1457 = vmatpush1.msra.mxu0 0.0
    %1458 = vmatprep.subr.mxu0 0.0
    %1459 = vmatpush1.msra.mxu0 0.0
    %1460 = vmatprep.subr.mxu0 0.0
    %1461 = vmatpush1.msra.mxu0 0.0
    %1462 = vmatprep.subr.mxu0 0.0
    %1463 = vmatpush1.msra.mxu0 0.0
    %1464 = vmatprep.subr.mxu0 0.0
    %1465 = vmatpush1.msra.mxu0 0.0
    %1466 = vmatprep.subr.mxu0 0.0
    %1467 = vmatpush1.msra.mxu0 0.0
    %1468 = vmatprep.subr.mxu0 0.0
    %1469 = vmatpush1.msra.mxu0 0.0
    %1470 = vmatprep.subr.mxu0 0.0
    %1471 = vmatpush1.msra.mxu0 0.0
    %1472 = vmatprep.subr.mxu0 0.0
    %1473 = vmatpush1.msra.mxu0 0.0
    %1474 = vmatprep.subr.mxu0 0.0
    %1475 = vmatpush1.msra.mxu0 0.0
    %1476 = vmatprep.subr.mxu0 0.0
    %1477 = vmatpush1.msra.mxu0 0.0
    %1478 = vmatprep.subr.mxu0 0.0
    %1479 = vmatpush1.msra.mxu0 0.0
    %1480 = vmatprep.subr.mxu0 0.0
    %1481 = vmatpush1.msra.mxu0 0.0
    %1482 = vmatprep.subr.mxu0 0.0
    %1483 = vmatpush1.msra.mxu0 0.0
    %1484 = vmatprep.subr.mxu0 0.0
    %1485 = vmatpush1.msra.mxu0 0.0
    %1486 = vmatprep.mubr.f32.mxu0 0.0
    %1487 = vmatmul.mubr.f32.gmra.mrb[0].mxu0 %v1420
    %v1488 = vpop.f32.mrb[0].mxu0
    %v1489 = vadd.f32 0.0, %v1488
    %v1490 = vpop.f32.mrb[0].mxu0
    %1491 = vdwg.mxu0
    %1493 = vrot.lane.b32.xlu0 %v1159, 8
    %v1494 = vpop.permute.xlu0 %1493
    %1497 = vrot.lane.b32.xlu0 %v1324, 16
    %v1498 = vpop.permute.xlu0 %1497
    %1501 = vrot.lane.b32.xlu0 %v1489, 24
    %v1502 = vpop.permute.xlu0 %1501
    %v1504 = vsel %vm159, %v994, %v1494
    %v1505 = vsel %vm829, %v1504, %v1498
    %v1506 = vsel %vm831, %v1505, %v1502
    %v1507 = vld [vmem:[#allocation6] sm:$0xff]
    %v1508 = vld [vmem:[#allocation6 + $0x8] sm:$0xff]
    %v1509 = vld [vmem:[#allocation6 + $0x10] sm:$0xff]
    %v1510 = vld [vmem:[#allocation6 + $0x18] sm:$0xff]
    %v1511 = vld [vmem:[%s4] sm:$0x1]
    %v1513 = vlaneseq
    %v1514 = vshrl.u32 %v1513, 7
    %v1515 = vsub.s32 0, %v1514
    %v1516 = vrot.slane %v1511, %v1515
    %v1519 = vsel %vm74, %v832, 0
    %v1522 = vsel %vm74, %v1506, 0
    %1524 = vmatprep.subr.mxu0 0.0
    %1525 = vmatpush1.msra.mxu0 %v1507
    %1526 = vmatprep.subr.mxu0 0.0
    %1527 = vmatpush1.msra.mxu0 %v1508
    %1528 = vmatprep.subr.mxu0 0.0
    %1529 = vmatpush1.msra.mxu0 %v1509
    %1530 = vmatprep.subr.mxu0 0.0
    %1531 = vmatpush1.msra.mxu0 %v1510
    %1532 = vmatprep.subr.mxu0 0.0
    %1533 = vmatpush1.msra.mxu0 0.0
    %1534 = vmatprep.subr.mxu0 0.0
    %1535 = vmatpush1.msra.mxu0 0.0
    %1536 = vmatprep.subr.mxu0 0.0
    %1537 = vmatpush1.msra.mxu0 0.0
    %1538 = vmatprep.subr.mxu0 0.0
    %1539 = vmatpush1.msra.mxu0 0.0
    %1540 = vmatprep.subr.mxu0 0.0
    %1541 = vmatpush1.msra.mxu0 0.0
    %1542 = vmatprep.subr.mxu0 0.0
    %1543 = vmatpush1.msra.mxu0 0.0
    %1544 = vmatprep.subr.mxu0 0.0
    %1545 = vmatpush1.msra.mxu0 0.0
    %1546 = vmatprep.subr.mxu0 0.0
    %1547 = vmatpush1.msra.mxu0 0.0
    %1548 = vmatprep.subr.mxu0 0.0
    %1549 = vmatpush1.msra.mxu0 0.0
    %1550 = vmatprep.subr.mxu0 0.0
    %1551 = vmatpush1.msra.mxu0 0.0
    %1552 = vmatprep.subr.mxu0 0.0
    %1553 = vmatpush1.msra.mxu0 0.0
    %1554 = vmatprep.subr.mxu0 0.0
    %1555 = vmatpush1.msra.mxu0 0.0
    %1556 = vmatprep.subr.mxu0 0.0
    %1557 = vmatpush1.msra.mxu0 0.0
    %1558 = vmatprep.subr.mxu0 0.0
    %1559 = vmatpush1.msra.mxu0 0.0
    %1560 = vmatprep.subr.mxu0 0.0
    %1561 = vmatpush1.msra.mxu0 0.0
    %1562 = vmatprep.subr.mxu0 0.0
    %1563 = vmatpush1.msra.mxu0 0.0
    %1564 = vmatprep.subr.mxu0 0.0
    %1565 = vmatpush1.msra.mxu0 0.0
    %1566 = vmatprep.subr.mxu0 0.0
    %1567 = vmatpush1.msra.mxu0 0.0
    %1568 = vmatprep.subr.mxu0 0.0
    %1569 = vmatpush1.msra.mxu0 0.0
    %1570 = vmatprep.subr.mxu0 0.0
    %1571 = vmatpush1.msra.mxu0 0.0
    %1572 = vmatprep.subr.mxu0 0.0
    %1573 = vmatpush1.msra.mxu0 0.0
    %1574 = vmatprep.subr.mxu0 0.0
    %1575 = vmatpush1.msra.mxu0 0.0
    %1576 = vmatprep.subr.mxu0 0.0
    %1577 = vmatpush1.msra.mxu0 0.0
    %1578 = vmatprep.subr.mxu0 0.0
    %1579 = vmatpush1.msra.mxu0 0.0
    %1580 = vmatprep.subr.mxu0 0.0
    %1581 = vmatpush1.msra.mxu0 0.0
    %1582 = vmatprep.subr.mxu0 0.0
    %1583 = vmatpush1.msra.mxu0 0.0
    %1584 = vmatprep.subr.mxu0 0.0
    %1585 = vmatpush1.msra.mxu0 0.0
    %1586 = vmatprep.subr.mxu0 0.0
    %1587 = vmatpush1.msra.mxu0 0.0
    %1588 = vmatprep.mubr.f32.mxu0 0.0
    %1589 = vmatmul.mubr.f32.gmra.mrb[0].mxu0 %v1519
    %v1590 = vpop.f32.mrb[0].mxu0
    %v1591 = vadd.f32 %v1516, %v1590
    %v1592 = vpop.f32.mrb[0].mxu0
    %1593 = vmatprep.mubr.f32.mxu0 0.0
    %1594 = vmatmul.mubr.f32.gmra.mrb[0].mxu0 %v1522
    %v1595 = vpop.f32.mrb[0].mxu0
    %v1596 = vadd.f32 %v1516, %v1595
    %v1597 = vpop.f32.mrb[0].mxu0
    %1598 = vdwg.mxu0
    %1599 = vst [vmem:[%s5] sm:$0xff] %v1591
    %1600 = vst [vmem:[%s5 + $0x8] sm:$0xff] %v1596
    // Predicated region
    $region34: #{self_attention.1} parent=1 // pred_check
      _
    $region35: #{self_attention.1} parent=1 // pred_check_branch
      %1602 = sbr.rel (0) target = $region37
    $region36: #{self_attention.1} parent=1 // pred_region
      _
    $region37: #{self_attention.1} parent=1 // pred_fallthru
      _
    // Predicated region
    $region38: #{self_attention.1} parent=1 // pred_check
      _
    $region39: #{self_attention.1} parent=1 // pred_check_branch
      %1604 = sbr.rel (0) target = $region41
    $region40: #{self_attention.1} parent=1 // pred_region
      _
    $region41: #{self_attention.1} parent=1 // pred_fallthru
      _
    %1605 = vsyncpa [#allocation3], 1
    %1606 = vsyncpa [#allocation5], 1

</llo_original>
